<compile_context>
chip_gen: v6e
topology: v6e:2x2x1
jax: 0.10.0
libtpu: 0.0.40
codegen_flags: <defaults>
</compile_context>

<pallas_src>
import math
import functools

import jax
import jax.numpy as jnp
from jax import lax
from jax.experimental import pallas as pl
from jax.experimental.pallas import tpu as pltpu


# Contract the last dim of both operands (i.e. a @ b.T without a transpose).
_DN_LAST = (((1,), (1,)), ((), ()))


# ---------------------------------------------------------------------------
# Kernel 1: fused QKV projection + lane-dense RoPE.
# ---------------------------------------------------------------------------
def _proj_rope_kernel(x_ref, w_ref, cos_ref, sin_ref, q_ref, k_ref, v_ref, *,
                      num_heads, d_k, d_model):
    d2 = d_k // 2
    hd2 = num_heads * d2

    x = x_ref[0]                                            # (tq, d_model) bf16
    qkv = lax.dot_general(x, w_ref[...], _DN_LAST,
                          preferred_element_type=jnp.float32)   # (tq, 3*d_model) f32
    q = qkv[:, :d_model]
    k = qkv[:, d_model:2 * d_model]
    v = qkv[:, 2 * d_model:]

    # cos/sin arrive as (tq, d2); broadcast across heads in-kernel (cheap lane
    # concat) instead of DMA-ing num_heads-x redundant tables every grid step.
    cos = jnp.tile(cos_ref[...], (1, num_heads))            # (tq, hd2) f32
    sin = jnp.tile(sin_ref[...], (1, num_heads))

    # RoPE once, on lane-dense (tq, d_model/2) halves (even comps | odd comps).
    qe, qo = q[:, :hd2], q[:, hd2:]
    ke, ko = k[:, :hd2], k[:, hd2:]
    rqe = (qe * cos - qo * sin).astype(q_ref.dtype)
    rqo = (qe * sin + qo * cos).astype(q_ref.dtype)
    rke = (ke * cos - ko * sin).astype(k_ref.dtype)
    rko = (ke * sin + ko * cos).astype(k_ref.dtype)

    # Relayout to head-major [even | odd] blocks of width d_k (cast to bf16
    # BEFORE the shuffle so only half the bytes move through the XLU).
    # TODO(synk): for very large head counts a structured (tq,H,2,d2) reshape or
    # strided stores would cut the 2*H narrow concat pieces further.
    qparts, kparts = [], []
    for h in range(num_heads):
        sl = slice(h * d2, (h + 1) * d2)
        qparts += [rqe[:, sl], rqo[:, sl]]
        kparts += [rke[:, sl], rko[:, sl]]
    q_ref[0] = jnp.concatenate(qparts, axis=1)
    k_ref[0] = jnp.concatenate(kparts, axis=1)
    v_ref[0] = v.astype(v_ref.dtype)


# ---------------------------------------------------------------------------
# Kernel 2: flash attention (causal), outputs normalized context (bf16).
# ---------------------------------------------------------------------------
def _flash_attn_kernel(q_ref, k_ref, v_ref, o_ref, m_sc, l_sc, acc_sc, *,
                       num_heads, d_k, tq, tk):
    qi = pl.program_id(1)
    ki = pl.program_id(2)
    nkv = pl.num_programs(2)

    @pl.when(ki == 0)
    def _init():
        m_sc[...] = jnp.full(m_sc.shape, -jnp.inf, dtype=m_sc.dtype)
        l_sc[...] = jnp.zeros(l_sc.shape, dtype=l_sc.dtype)
        acc_sc[...] = jnp.zeros(acc_sc.shape, dtype=acc_sc.dtype)

    q_start = qi * tq
    k_start = ki * tk

    def kv_step(masked):
        q = q_ref[0]                        # (tq, d_model) bf16 (pre-scaled, RoPE'd)
        k = k_ref[0]                        # (tk, d_model) bf16
        v = v_ref[0]                        # (tk, d_model) bf16 (interleaved layout)
        if masked:
            row = q_start + lax.broadcasted_iota(jnp.int32, (tq, tk), 0)
            col = k_start + lax.broadcasted_iota(jnp.int32, (tq, tk), 1)
            causal = row >= col
        # NOTE(synk): static unroll over heads; for num_heads >= ~8 a
        # lax.fori_loop over heads would bound vreg live ranges better.
        for h in range(num_heads):
            base = h * d_k
            s = lax.dot_general(q[:, base:base + d_k], k[:, base:base + d_k],
                                _DN_LAST, preferred_element_type=jnp.float32)
            if masked:
                s = jnp.where(causal, s, jnp.float32(-1e30))
            m_prev = m_sc[:, h:h + 1]
            m_new = jnp.maximum(m_prev, jnp.max(s, axis=-1, keepdims=True))
            alpha = jnp.exp(m_prev - m_new)
            # bf16 exponentials: EUP (exp) is the saturating unit for d_k <= 128
            # on v6e/v7x and the bf16 path roughly halves its cost; p feeds a
            # bf16 MXU dot anyway.  (On v5e this just adds two casts.)
            p = jnp.exp((s - m_new).astype(jnp.bfloat16))
            l_sc[:, h:h + 1] = (alpha * l_sc[:, h:h + 1]
                                + jnp.sum(p.astype(jnp.float32), axis=-1,
                                          keepdims=True))
            pv = jnp.dot(p, v[:, base:base + d_k],
                         preferred_element_type=jnp.float32)
            acc_sc[:, base:base + d_k] = alpha * acc_sc[:, base:base + d_k] + pv
            m_sc[:, h:h + 1] = m_new

    # Interior / diagonal split: tiles fully below the diagonal skip the iotas,
    # the compare and the per-head (tq, tk) selects entirely.
    interior = k_start + (tk - 1) <= q_start
    visible = k_start <= q_start + (tq - 1)
    diagonal = jnp.logical_and(visible, jnp.logical_not(interior))

    @pl.when(interior)
    def _interior():
        kv_step(masked=False)

    @pl.when(diagonal)
    def _diagonal():
        kv_step(masked=True)

    @pl.when(ki == nkv - 1)
    def _finalize():
        inv_l = pl.reciprocal(l_sc[...], approx=True)       # (tq, H) on EUP
        # Scale acc in place per head, then ONE full-width store (no 2H-piece
        # concatenate / cross-lane shuffles in the epilogue).
        for h in range(num_heads):
            base = h * d_k
            acc_sc[:, base:base + d_k] = (acc_sc[:, base:base + d_k]
                                          * inv_l[:, h:h + 1])
        o_ref[0] = acc_sc[...].astype(o_ref.dtype)


# ---------------------------------------------------------------------------
# Kernel 3: output projection ctx @ W_o.T, W_o streamed in (tn, d_model) tiles.
# ---------------------------------------------------------------------------
def _out_proj_kernel(x_ref, w_ref, o_ref):
    o_ref[...] = lax.dot_general(x_ref[...], w_ref[...], _DN_LAST,
                                 preferred_element_type=jnp.float32
                                 ).astype(o_ref.dtype)


# ---------------------------------------------------------------------------
# Tiling helpers.
# ---------------------------------------------------------------------------
def _pick_tile(n, target):
    """Largest t <= target dividing n, preferring 256/128/16/8 alignment."""
    if n <= target:
        return n
    for align in (256, 128, 16, 8):
        t = (target // align) * align
        while t >= align:
            if n % t == 0:
                return t
            t -= align
    # TODO(synk): pad + mask awkward sequence lengths instead of full fallback.
    return n


def _pick_lane_tile(n, target):
    """Lane-dim tile: a multiple of 128 dividing n, else the full dim."""
    if n <= target:
        return n
    t = (target // 128) * 128
    while t >= 128:
        if n % t == 0:
            return t
        t -= 128
    return n


def _vmem_budget(nbytes):
    # Derive the scoped-VMEM limit from the footprint (with headroom) instead
    # of a constant; cap at 64 MiB so the same config also fits v7x.  On
    # v5e/v6e (128 MiB physical) this could be raised further for bigger tiles.
    return int(min(64 * 1024 * 1024, max(32 * 1024 * 1024, 2 * int(nbytes))))


# ---------------------------------------------------------------------------
# Public wrapper.
# ---------------------------------------------------------------------------
def multihead_self_attention(x, W_q, W_k, W_v, W_o, *, num_heads, theta,
                             token_positions=None, q_tile=256, kv_tile=256):
    batch, seq, d_model = x.shape
    assert d_model % num_heads == 0, "d_model must be divisible by num_heads"
    d_k = d_model // num_heads
    assert d_k % 2 == 0, "RoPE requires an even d_k"
    d2 = d_k // 2
    out_dtype = x.dtype

    # ---- host-side prep: permutation, scale fold, fused QKV weight, tables ----
    even_idx = [h * d_k + 2 * kk for h in range(num_heads) for kk in range(d2)]
    odd_idx = [h * d_k + 2 * kk + 1 for h in range(num_heads) for kk in range(d2)]
    perm = jnp.asarray(even_idx + odd_idx, dtype=jnp.int32)

    scale = 1.0 / math.sqrt(d_k)
    W_q_p = (W_q * scale)[perm, :]                 # 1/sqrt(d_k) folded into W_q
    W_k_p = W_k[perm, :]
    # One fused (3*d_model, d_model) weight -> one weight-stationary MXU pass.
    W_qkv = jnp.concatenate([W_q_p, W_k_p, W_v], axis=0).astype(jnp.bfloat16)
    W_o_b = W_o.astype(jnp.bfloat16)
    x_b = x.astype(jnp.bfloat16)

    if token_positions is None:
        token_positions = jnp.arange(seq)
    pos = token_positions.astype(jnp.float32)[:, None]                      # (seq, 1)
    inv_freq = theta ** (-(2.0 * jnp.arange(d2, dtype=jnp.float32)) / d_k)  # (d2,)
    ang = pos * inv_freq[None, :]                                           # (seq, d2)
    cos_t = jnp.cos(ang)                                                    # (seq, d2)
    sin_t = jnp.sin(ang)

    tq = _pick_tile(seq, q_tile)
    tk = _pick_tile(seq, kv_tile)
    nq = seq // tq
    nk = seq // tk

    # Rough per-kernel VMEM footprints (bytes), used to size vmem_limit_bytes.
    k1_bytes = (2 * int(W_qkv.size) * 2 + 2 * tq * d_model * 2
                + 4 * tq * d2 * 4 + 6 * tq * d_model * 2
                + 4 * tq * 3 * d_model * 4)
    k2_bytes = (2 * (tq + 2 * tk) * d_model * 2 + 2 * tq * d_model * 2
                + tq * d_model * 4 + 2 * tq * num_heads * 4
                + 6 * tq * tk * 4)

    # ---- kernel 1: fused QKV projection + RoPE ----
    proj = functools.partial(_proj_rope_kernel, num_heads=num_heads, d_k=d_k,
                             d_model=d_model)
    qkv_shape = jax.ShapeDtypeStruct((batch, seq, d_model), jnp.bfloat16)
    seq_block = pl.BlockSpec((1, tq, d_model), lambda i, b: (b, i, 0))
    rope_block = pl.BlockSpec((tq, d2), lambda i, b: (i, 0))

    def run_proj(single_buffer_weight):
        if single_buffer_weight:
            # Constant-index weight: a single pipeline buffer is enough (halves
            # the resident weight footprint; no DMA is re-issued either way).
            w_spec = pl.BlockSpec(W_qkv.shape, lambda i, b: (0, 0),
                                  pipeline_mode=pl.Buffered(1))
        else:
            w_spec = pl.BlockSpec(W_qkv.shape, lambda i, b: (0, 0))
        return pl.pallas_call(
            proj,
            out_shape=(qkv_shape, qkv_shape, qkv_shape),
            grid=(nq, batch),   # batch innermost: weight & cos/sin blocks stay put
            in_specs=[seq_block, w_spec, rope_block, rope_block],
            out_specs=[seq_block, seq_block, seq_block],
            compiler_params=pltpu.CompilerParams(
                dimension_semantics=("parallel", "parallel"),
                vmem_limit_bytes=_vmem_budget(k1_bytes)),
        )(x_b, W_qkv, cos_t, sin_t)

    try:
        q_rot, k_rot, v_p = run_proj(True)
    except Exception:
        # pipeline_mode / pl.Buffered not supported on this jax version.
        q_rot, k_rot, v_p = run_proj(False)

    # ---- kernel 2: flash attention (no resident W_o) ----
    def kv_index(b, i, j):
        # Clamp the kv block index for causally-skipped steps: returning the
        # SAME block index as the previous step means Pallas issues no new DMA,
        # so ~half of all K/V HBM reads are elided for causal attention.
        last = (i * tq + tq - 1) // tk
        return (b, jnp.minimum(j, last), 0)

    flash = functools.partial(_flash_attn_kernel, num_heads=num_heads,
                              d_k=d_k, tq=tq, tk=tk)
    ctx = pl.pallas_call(
        flash,
        out_shape=jax.ShapeDtypeStruct((batch, seq, d_model), jnp.bfloat16),
        grid=(batch, nq, nk),   # leading batch axis -> balanced megacore split on v7x
        in_specs=[
            pl.BlockSpec((1, tq, d_model), lambda b, i, j: (b, i, 0)),
            pl.BlockSpec((1, tk, d_model), kv_index),
            pl.BlockSpec((1, tk, d_model), kv_index),
        ],
        out_specs=pl.BlockSpec((1, tq, d_model), lambda b, i, j: (b, i, 0)),
        scratch_shapes=[
            pltpu.VMEM((tq, num_heads), jnp.float32),   # running max m
            pltpu.VMEM((tq, num_heads), jnp.float32),   # running sum l
            pltpu.VMEM((tq, d_model), jnp.float32),     # context accumulator
        ],
        compiler_params=pltpu.CompilerParams(
            dimension_semantics=("parallel", "parallel", "arbitrary"),
            vmem_limit_bytes=_vmem_budget(k2_bytes)),
    )(q_rot, k_rot, v_p)

    # ---- kernel 3: tiled output projection ctx @ W_o.T ----
    rows = batch * seq
    tm = _pick_tile(rows, 256)
    tn = _pick_lane_tile(d_model, 256)
    k3_bytes = (2 * tm * d_model * 2 + 2 * tn * d_model * 2
                + 2 * tm * tn * jnp.dtype(out_dtype).itemsize + tm * tn * 4)
    ctx2 = ctx.reshape(rows, d_model)
    out2 = pl.pallas_call(
        _out_proj_kernel,
        out_shape=jax.ShapeDtypeStruct((rows, d_model), out_dtype),
        grid=(rows // tm, d_model // tn),
        in_specs=[
            pl.BlockSpec((tm, d_model), lambda r, c: (r, 0)),
            pl.BlockSpec((tn, d_model), lambda r, c: (c, 0)),
        ],
        out_specs=pl.BlockSpec((tm, tn), lambda r, c: (r, c)),
        compiler_params=pltpu.CompilerParams(
            dimension_semantics=("parallel", "parallel"),
            vmem_limit_bytes=_vmem_budget(k3_bytes)),
    )(ctx2, W_o_b)
    return out2.reshape(batch, seq, d_model)


# ---------------------------------------------------------------------------
# Pure-JAX f32 reference (mirrors the PyTorch forward, interleaved RoPE).
# ---------------------------------------------------------------------------
def reference_mhsa(x, W_q, W_k, W_v, W_o, *, num_heads, theta, token_positions=None):
    batch, seq, d_model = x.shape
    d_k = d_model // num_heads
    d2 = d_k // 2

    Q = x @ W_q.T
    K = x @ W_k.T
    V = x @ W_v.T

    def split(t):
        return t.reshape(batch, seq, num_heads, d_k).transpose(0, 2, 1, 3)

    Qh, Kh, Vh = split(Q), split(K), split(V)

    if token_positions is None:
        token_positions = jnp.arange(seq)
    pos = token_positions.astype(jnp.float32)[:, None]
    inv_freq = theta ** (-(2.0 * jnp.arange(d2, dtype=jnp.float32)) / d_k)
    ang = pos * inv_freq[None, :]
    cos, sin = jnp.cos(ang), jnp.sin(ang)

    def rope(t):  # interleaved pairs along last axis
        te = t[..., 0::2]
        to = t[..., 1::2]
        re = te * cos - to * sin
        ro = te * sin + to * cos
        return jnp.stack([re, ro], axis=-1).reshape(t.shape)

    Qh = rope(Qh)
    Kh = rope(Kh)

    scores = jnp.einsum('bhqd,bhkd->bhqk', Qh, Kh) / jnp.sqrt(jnp.float32(d_k))
    mask = jnp.tril(jnp.ones((seq, seq), jnp.float32))
    scores = jnp.where(mask == 0, -jnp.inf, scores)
    scores = scores - jnp.max(scores, axis=-1, keepdims=True)
    p = jnp.exp(scores)
    p = p / jnp.sum(p, axis=-1, keepdims=True)
    out = jnp.einsum('bhqk,bhkd->bhqd', p, Vh)
    out = out.transpose(0, 2, 1, 3).reshape(batch, seq, d_model)
    return out @ W_o.T


def _make_weights(key, d_model, num_heads):
    d_k = d_model // num_heads
    kq, kk_, kv, ko = jax.random.split(key, 4)
    sigma = math.sqrt(2.0 / (d_k * num_heads + d_model))

    def trunc_init(k, shape):
        return (sigma * jax.random.truncated_normal(k, -3.0, 3.0, shape)).astype(jnp.float32)

    W_q = trunc_init(kq, (d_k * num_heads, d_model))
    W_k = trunc_init(kk_, (d_k * num_heads, d_model))
    W_v = trunc_init(kv, (d_k * num_heads, d_model))
    W_o = trunc_init(ko, (d_model, d_k * num_heads))
    return W_q, W_k, W_v, W_o


if __name__ == "__main__":
    theta = 10000.0
    key = jax.random.PRNGKey(0)

    # --- small config (single tile path) ---
    batch, seq, d_model, num_heads = 2, 8, 32, 4
    kx, kw = jax.random.split(key)
    W_q, W_k, W_v, W_o = _make_weights(kw, d_model, num_heads)
    x = jax.random.normal(kx, (batch, seq, d_model), dtype=jnp.float32)

    out = multihead_self_attention(x, W_q, W_k, W_v, W_o,
                                   num_heads=num_heads, theta=theta)
    out = jax.block_until_ready(out)
    ref = jax.block_until_ready(
        reference_mhsa(x, W_q, W_k, W_v, W_o, num_heads=num_heads, theta=theta))
    assert out.shape == (batch, seq, d_model)
    # bf16 MXU/EUP paths -> loosen tolerance vs the f32 reference.
    assert jnp.allclose(out, ref, atol=2e-2, rtol=2e-2), \
        f"small config: max abs err = {float(jnp.max(jnp.abs(out - ref)))}"

    # --- larger config (exercises tiling, online softmax, causal compute+DMA skip) ---
    batch, seq, d_model, num_heads = 2, 256, 128, 4
    kx2, kw2 = jax.random.split(jax.random.PRNGKey(1))
    W_q2, W_k2, W_v2, W_o2 = _make_weights(kw2, d_model, num_heads)
    x2 = jax.random.normal(kx2, (batch, seq, d_model), dtype=jnp.float32)

    out2 = multihead_self_attention(x2, W_q2, W_k2, W_v2, W_o2,
                                    num_heads=num_heads, theta=theta,
                                    q_tile=128, kv_tile=128)
    out2 = jax.block_until_ready(out2)
    ref2 = jax.block_until_ready(
        reference_mhsa(x2, W_q2, W_k2, W_v2, W_o2, num_heads=num_heads, theta=theta))
    assert out2.shape == (batch, seq, d_model)
    assert jnp.allclose(out2, ref2, atol=5e-2, rtol=5e-2), \
        f"tiled config: max abs err = {float(jnp.max(jnp.abs(out2 - ref2)))}"

    print("KERNEL_OK")
</pallas_src>

<mosaic_0001>
module attributes {stable_mosaic.version = 11 : i64} {
  func.func @_proj_rope_kernel(%arg0: i32, %arg1: i32, %arg2: memref<1x8x32xbf16, #tpu.memory_space<vmem>>, %arg3: memref<96x32xbf16, #tpu.memory_space<vmem>>, %arg4: memref<8x4xf32, #tpu.memory_space<vmem>>, %arg5: memref<8x4xf32, #tpu.memory_space<vmem>>, %arg6: memref<1x8x32xbf16, #tpu.memory_space<vmem>>, %arg7: memref<1x8x32xbf16, #tpu.memory_space<vmem>>, %arg8: memref<1x8x32xbf16, #tpu.memory_space<vmem>>) attributes {dimension_semantics = [#tpu.dimension_semantics<parallel>, #tpu.dimension_semantics<parallel>], iteration_bounds = array<i64: 1, 2>, scalar_prefetch = 0 : i64, scratch_operands = 0 : i64, tpu.core_type = #tpu.core_type<tc>, window_params = [{transform_indices = @transform_0, window_bounds = array<i64: 1, 8, 32>}, {pipeline_mode = #tpu.pipeline_mode<synchronous>, transform_indices = @transform_1, window_bounds = array<i64: 96, 32>}, {transform_indices = @transform_2, window_bounds = array<i64: 8, 4>}, {transform_indices = @transform_3, window_bounds = array<i64: 8, 4>}, {transform_indices = @transform_4, window_bounds = array<i64: 1, 8, 32>}, {transform_indices = @transform_5, window_bounds = array<i64: 1, 8, 32>}, {transform_indices = @transform_6, window_bounds = array<i64: 1, 8, 32>}]} {
    %c0 = arith.constant 0 : index
    %c0_0 = arith.constant 0 : index
    %c0_1 = arith.constant 0 : index
    %0 = vector.load %arg2[%c0, %c0_0, %c0_1] : memref<1x8x32xbf16, #tpu.memory_space<vmem>>, vector<1x8x32xbf16>
    %1 = vector.shape_cast %0 : vector<1x8x32xbf16> to vector<8x32xbf16>
    %c0_2 = arith.constant 0 : index
    %c0_3 = arith.constant 0 : index
    %2 = vector.load %arg3[%c0_2, %c0_3] : memref<96x32xbf16, #tpu.memory_space<vmem>>, vector<96x32xbf16>
    %cst = arith.constant dense<0.000000e+00> : vector<8x96xf32>
    %3 = tpu.matmul %1, %2, %cst {dimension_numbers = #tpu.dot_dimension_numbers<[1], [1], [0], [0], [0, 0, 1, 0], [], []>} : vector<8x32xbf16>, vector<96x32xbf16>, vector<8x96xf32> -> vector<8x96xf32>
    %4 = vector.extract_strided_slice %3 {offsets = [0, 0], sizes = [8, 32], strides = [1, 1]} : vector<8x96xf32> to vector<8x32xf32>
    %5 = vector.extract_strided_slice %3 {offsets = [0, 32], sizes = [8, 32], strides = [1, 1]} : vector<8x96xf32> to vector<8x32xf32>
    %6 = vector.extract_strided_slice %3 {offsets = [0, 64], sizes = [8, 32], strides = [1, 1]} : vector<8x96xf32> to vector<8x32xf32>
    %c0_4 = arith.constant 0 : index
    %c0_5 = arith.constant 0 : index
    %7 = vector.load %arg4[%c0_4, %c0_5] : memref<8x4xf32, #tpu.memory_space<vmem>>, vector<8x4xf32>
    %8 = tpu.concatenate %7, %7, %7, %7 in 1 : vector<8x4xf32>, vector<8x4xf32>, vector<8x4xf32>, vector<8x4xf32> -> vector<8x16xf32>
    %c0_6 = arith.constant 0 : index
    %c0_7 = arith.constant 0 : index
    %9 = vector.load %arg5[%c0_6, %c0_7] : memref<8x4xf32, #tpu.memory_space<vmem>>, vector<8x4xf32>
    %10 = tpu.concatenate %9, %9, %9, %9 in 1 : vector<8x4xf32>, vector<8x4xf32>, vector<8x4xf32>, vector<8x4xf32> -> vector<8x16xf32>
    %11 = vector.extract_strided_slice %4 {offsets = [0, 0], sizes = [8, 16], strides = [1, 1]} : vector<8x32xf32> to vector<8x16xf32>
    %12 = vector.extract_strided_slice %4 {offsets = [0, 16], sizes = [8, 16], strides = [1, 1]} : vector<8x32xf32> to vector<8x16xf32>
    %13 = vector.extract_strided_slice %5 {offsets = [0, 0], sizes = [8, 16], strides = [1, 1]} : vector<8x32xf32> to vector<8x16xf32>
    %14 = vector.extract_strided_slice %5 {offsets = [0, 16], sizes = [8, 16], strides = [1, 1]} : vector<8x32xf32> to vector<8x16xf32>
    %15 = arith.mulf %11, %8 : vector<8x16xf32>
    %16 = arith.mulf %12, %10 : vector<8x16xf32>
    %17 = arith.subf %15, %16 : vector<8x16xf32>
    %18 = arith.truncf %17 : vector<8x16xf32> to vector<8x16xbf16>
    %19 = arith.mulf %11, %10 : vector<8x16xf32>
    %20 = arith.mulf %12, %8 : vector<8x16xf32>
    %21 = arith.addf %19, %20 : vector<8x16xf32>
    %22 = arith.truncf %21 : vector<8x16xf32> to vector<8x16xbf16>
    %23 = arith.mulf %13, %8 : vector<8x16xf32>
    %24 = arith.mulf %14, %10 : vector<8x16xf32>
    %25 = arith.subf %23, %24 : vector<8x16xf32>
    %26 = arith.truncf %25 : vector<8x16xf32> to vector<8x16xbf16>
    %27 = arith.mulf %13, %10 : vector<8x16xf32>
    %28 = arith.mulf %14, %8 : vector<8x16xf32>
    %29 = arith.addf %27, %28 : vector<8x16xf32>
    %30 = arith.truncf %29 : vector<8x16xf32> to vector<8x16xbf16>
    %31 = vector.extract_strided_slice %18 {offsets = [0, 0], sizes = [8, 4], strides = [1, 1]} : vector<8x16xbf16> to vector<8x4xbf16>
    %32 = vector.extract_strided_slice %22 {offsets = [0, 0], sizes = [8, 4], strides = [1, 1]} : vector<8x16xbf16> to vector<8x4xbf16>
    %33 = vector.extract_strided_slice %26 {offsets = [0, 0], sizes = [8, 4], strides = [1, 1]} : vector<8x16xbf16> to vector<8x4xbf16>
    %34 = vector.extract_strided_slice %30 {offsets = [0, 0], sizes = [8, 4], strides = [1, 1]} : vector<8x16xbf16> to vector<8x4xbf16>
    %35 = vector.extract_strided_slice %18 {offsets = [0, 4], sizes = [8, 4], strides = [1, 1]} : vector<8x16xbf16> to vector<8x4xbf16>
    %36 = vector.extract_strided_slice %22 {offsets = [0, 4], sizes = [8, 4], strides = [1, 1]} : vector<8x16xbf16> to vector<8x4xbf16>
    %37 = vector.extract_strided_slice %26 {offsets = [0, 4], sizes = [8, 4], strides = [1, 1]} : vector<8x16xbf16> to vector<8x4xbf16>
    %38 = vector.extract_strided_slice %30 {offsets = [0, 4], sizes = [8, 4], strides = [1, 1]} : vector<8x16xbf16> to vector<8x4xbf16>
    %39 = vector.extract_strided_slice %18 {offsets = [0, 8], sizes = [8, 4], strides = [1, 1]} : vector<8x16xbf16> to vector<8x4xbf16>
    %40 = vector.extract_strided_slice %22 {offsets = [0, 8], sizes = [8, 4], strides = [1, 1]} : vector<8x16xbf16> to vector<8x4xbf16>
    %41 = vector.extract_strided_slice %26 {offsets = [0, 8], sizes = [8, 4], strides = [1, 1]} : vector<8x16xbf16> to vector<8x4xbf16>
    %42 = vector.extract_strided_slice %30 {offsets = [0, 8], sizes = [8, 4], strides = [1, 1]} : vector<8x16xbf16> to vector<8x4xbf16>
    %43 = vector.extract_strided_slice %18 {offsets = [0, 12], sizes = [8, 4], strides = [1, 1]} : vector<8x16xbf16> to vector<8x4xbf16>
    %44 = vector.extract_strided_slice %22 {offsets = [0, 12], sizes = [8, 4], strides = [1, 1]} : vector<8x16xbf16> to vector<8x4xbf16>
    %45 = vector.extract_strided_slice %26 {offsets = [0, 12], sizes = [8, 4], strides = [1, 1]} : vector<8x16xbf16> to vector<8x4xbf16>
    %46 = vector.extract_strided_slice %30 {offsets = [0, 12], sizes = [8, 4], strides = [1, 1]} : vector<8x16xbf16> to vector<8x4xbf16>
    %47 = tpu.concatenate %31, %32, %35, %36, %39, %40, %43, %44 in 1 : vector<8x4xbf16>, vector<8x4xbf16>, vector<8x4xbf16>, vector<8x4xbf16>, vector<8x4xbf16>, vector<8x4xbf16>, vector<8x4xbf16>, vector<8x4xbf16> -> vector<8x32xbf16>
    %c0_8 = arith.constant 0 : index
    %c0_9 = arith.constant 0 : index
    %c0_10 = arith.constant 0 : index
    %48 = vector.load %arg6[%c0_8, %c0_9, %c0_10] : memref<1x8x32xbf16, #tpu.memory_space<vmem>>, vector<1x8x32xbf16>
    %49 = vector.shape_cast %48 : vector<1x8x32xbf16> to vector<8x32xbf16>
    %50 = vector.shape_cast %47 : vector<8x32xbf16> to vector<1x8x32xbf16>
    tpu.vector_store %arg6[%c0_8, %c0_9, %c0_10], %50 {strides = array<i32>} : memref<1x8x32xbf16, #tpu.memory_space<vmem>>, vector<1x8x32xbf16>,
    %51 = tpu.concatenate %33, %34, %37, %38, %41, %42, %45, %46 in 1 : vector<8x4xbf16>, vector<8x4xbf16>, vector<8x4xbf16>, vector<8x4xbf16>, vector<8x4xbf16>, vector<8x4xbf16>, vector<8x4xbf16>, vector<8x4xbf16> -> vector<8x32xbf16>
    %c0_11 = arith.constant 0 : index
    %c0_12 = arith.constant 0 : index
    %c0_13 = arith.constant 0 : index
    %52 = vector.load %arg7[%c0_11, %c0_12, %c0_13] : memref<1x8x32xbf16, #tpu.memory_space<vmem>>, vector<1x8x32xbf16>
    %53 = vector.shape_cast %52 : vector<1x8x32xbf16> to vector<8x32xbf16>
    %54 = vector.shape_cast %51 : vector<8x32xbf16> to vector<1x8x32xbf16>
    tpu.vector_store %arg7[%c0_11, %c0_12, %c0_13], %54 {strides = array<i32>} : memref<1x8x32xbf16, #tpu.memory_space<vmem>>, vector<1x8x32xbf16>,
    %55 = arith.truncf %6 : vector<8x32xf32> to vector<8x32xbf16>
    %c0_14 = arith.constant 0 : index
    %c0_15 = arith.constant 0 : index
    %c0_16 = arith.constant 0 : index
    %56 = vector.load %arg8[%c0_14, %c0_15, %c0_16] : memref<1x8x32xbf16, #tpu.memory_space<vmem>>, vector<1x8x32xbf16>
    %57 = vector.shape_cast %56 : vector<1x8x32xbf16> to vector<8x32xbf16>
    %58 = vector.shape_cast %55 : vector<8x32xbf16> to vector<1x8x32xbf16>
    tpu.vector_store %arg8[%c0_14, %c0_15, %c0_16], %58 {strides = array<i32>} : memref<1x8x32xbf16, #tpu.memory_space<vmem>>, vector<1x8x32xbf16>,
    return
  }
  func.func @transform_0(%arg0: i32, %arg1: i32) -> (i32, i32, i32) {
    %c0_i32 = arith.constant 0 : i32
    %c0_i32_0 = arith.constant 0 : i32
    return %arg1, %arg0, %c0_i32 : i32, i32, i32
  }
  func.func @transform_1(%arg0: i32, %arg1: i32) -> (i32, i32) {
    %c0_i32 = arith.constant 0 : i32
    %c0_i32_0 = arith.constant 0 : i32
    %c0_i32_1 = arith.constant 0 : i32
    return %c0_i32, %c0_i32_0 : i32, i32
  }
  func.func @transform_2(%arg0: i32, %arg1: i32) -> (i32, i32) {
    %c0_i32 = arith.constant 0 : i32
    %c0_i32_0 = arith.constant 0 : i32
    return %arg0, %c0_i32 : i32, i32
  }
  func.func @transform_3(%arg0: i32, %arg1: i32) -> (i32, i32) {
    %c0_i32 = arith.constant 0 : i32
    %c0_i32_0 = arith.constant 0 : i32
    return %arg0, %c0_i32 : i32, i32
  }
  func.func @transform_4(%arg0: i32, %arg1: i32) -> (i32, i32, i32) {
    %c0_i32 = arith.constant 0 : i32
    %c0_i32_0 = arith.constant 0 : i32
    return %arg1, %arg0, %c0_i32 : i32, i32, i32
  }
  func.func @transform_5(%arg0: i32, %arg1: i32) -> (i32, i32, i32) {
    %c0_i32 = arith.constant 0 : i32
    %c0_i32_0 = arith.constant 0 : i32
    return %arg1, %arg0, %c0_i32 : i32, i32, i32
  }
  func.func @transform_6(%arg0: i32, %arg1: i32) -> (i32, i32, i32) {
    %c0_i32 = arith.constant 0 : i32
    %c0_i32_0 = arith.constant 0 : i32
    return %arg1, %arg0, %c0_i32 : i32, i32, i32
  }
}

module attributes {stable_mosaic.version = 11 : i64} {
  func.func @_proj_rope_kernel(%arg0: i32, %arg1: i32, %arg2: memref<1x8x32xbf16, #tpu.memory_space<vmem>>, %arg3: memref<96x32xbf16, #tpu.memory_space<vmem>>, %arg4: memref<8x4xf32, #tpu.memory_space<vmem>>, %arg5: memref<8x4xf32, #tpu.memory_space<vmem>>, %arg6: memref<1x8x32xbf16, #tpu.memory_space<vmem>>, %arg7: memref<1x8x32xbf16, #tpu.memory_space<vmem>>, %arg8: memref<1x8x32xbf16, #tpu.memory_space<vmem>>) attributes {dimension_semantics = [#tpu.dimension_semantics<parallel>, #tpu.dimension_semantics<parallel>], iteration_bounds = array<i64: 1, 2>, scalar_prefetch = 0 : i64, scratch_operands = 0 : i64, tpu.core_type = #tpu.core_type<tc>, window_params = [{transform_indices = @transform_0, window_bounds = array<i64: 1, 8, 32>}, {pipeline_mode = #tpu.pipeline_mode<synchronous>, transform_indices = @transform_1, window_bounds = array<i64: 96, 32>}, {transform_indices = @transform_2, window_bounds = array<i64: 8, 4>}, {transform_indices = @transform_3, window_bounds = array<i64: 8, 4>}, {transform_indices = @transform_4, window_bounds = array<i64: 1, 8, 32>}, {transform_indices = @transform_5, window_bounds = array<i64: 1, 8, 32>}, {transform_indices = @transform_6, window_bounds = array<i64: 1, 8, 32>}]} {
    %c0 = arith.constant 0 : index
    %c0_0 = arith.constant 0 : index
    %c0_1 = arith.constant 0 : index
    %0 = vector.load %arg2[%c0, %c0_0, %c0_1] : memref<1x8x32xbf16, #tpu.memory_space<vmem>>, vector<1x8x32xbf16>
    %1 = vector.shape_cast %0 : vector<1x8x32xbf16> to vector<8x32xbf16>
    %c0_2 = arith.constant 0 : index
    %c0_3 = arith.constant 0 : index
    %2 = vector.load %arg3[%c0_2, %c0_3] : memref<96x32xbf16, #tpu.memory_space<vmem>>, vector<96x32xbf16>
    %cst = arith.constant dense<0.000000e+00> : vector<8x96xf32>
    %3 = tpu.matmul %1, %2, %cst {dimension_numbers = #tpu.dot_dimension_numbers<[1], [1], [0], [0], [0, 0, 1, 0], [], []>} : vector<8x32xbf16>, vector<96x32xbf16>, vector<8x96xf32> -> vector<8x96xf32>
    %4 = vector.extract_strided_slice %3 {offsets = [0, 0], sizes = [8, 32], strides = [1, 1]} : vector<8x96xf32> to vector<8x32xf32>
    %5 = vector.extract_strided_slice %3 {offsets = [0, 32], sizes = [8, 32], strides = [1, 1]} : vector<8x96xf32> to vector<8x32xf32>
    %6 = vector.extract_strided_slice %3 {offsets = [0, 64], sizes = [8, 32], strides = [1, 1]} : vector<8x96xf32> to vector<8x32xf32>
    %c0_4 = arith.constant 0 : index
    %c0_5 = arith.constant 0 : index
    %7 = vector.load %arg4[%c0_4, %c0_5] : memref<8x4xf32, #tpu.memory_space<vmem>>, vector<8x4xf32>
    %8 = tpu.concatenate %7, %7, %7, %7 in 1 : vector<8x4xf32>, vector<8x4xf32>, vector<8x4xf32>, vector<8x4xf32> -> vector<8x16xf32>
    %c0_6 = arith.constant 0 : index
    %c0_7 = arith.constant 0 : index
    %9 = vector.load %arg5[%c0_6, %c0_7] : memref<8x4xf32, #tpu.memory_space<vmem>>, vector<8x4xf32>
    %10 = tpu.concatenate %9, %9, %9, %9 in 1 : vector<8x4xf32>, vector<8x4xf32>, vector<8x4xf32>, vector<8x4xf32> -> vector<8x16xf32>
    %11 = vector.extract_strided_slice %4 {offsets = [0, 0], sizes = [8, 16], strides = [1, 1]} : vector<8x32xf32> to vector<8x16xf32>
    %12 = vector.extract_strided_slice %4 {offsets = [0, 16], sizes = [8, 16], strides = [1, 1]} : vector<8x32xf32> to vector<8x16xf32>
    %13 = vector.extract_strided_slice %5 {offsets = [0, 0], sizes = [8, 16], strides = [1, 1]} : vector<8x32xf32> to vector<8x16xf32>
    %14 = vector.extract_strided_slice %5 {offsets = [0, 16], sizes = [8, 16], strides = [1, 1]} : vector<8x32xf32> to vector<8x16xf32>
    %15 = arith.mulf %11, %8 : vector<8x16xf32>
    %16 = arith.mulf %12, %10 : vector<8x16xf32>
    %17 = arith.subf %15, %16 : vector<8x16xf32>
    %18 = arith.truncf %17 : vector<8x16xf32> to vector<8x16xbf16>
    %19 = arith.mulf %11, %10 : vector<8x16xf32>
    %20 = arith.mulf %12, %8 : vector<8x16xf32>
    %21 = arith.addf %19, %20 : vector<8x16xf32>
    %22 = arith.truncf %21 : vector<8x16xf32> to vector<8x16xbf16>
    %23 = arith.mulf %13, %8 : vector<8x16xf32>
    %24 = arith.mulf %14, %10 : vector<8x16xf32>
    %25 = arith.subf %23, %24 : vector<8x16xf32>
    %26 = arith.truncf %25 : vector<8x16xf32> to vector<8x16xbf16>
    %27 = arith.mulf %13, %10 : vector<8x16xf32>
    %28 = arith.mulf %14, %8 : vector<8x16xf32>
    %29 = arith.addf %27, %28 : vector<8x16xf32>
    %30 = arith.truncf %29 : vector<8x16xf32> to vector<8x16xbf16>
    %31 = vector.extract_strided_slice %18 {offsets = [0, 0], sizes = [8, 4], strides = [1, 1]} : vector<8x16xbf16> to vector<8x4xbf16>
    %32 = vector.extract_strided_slice %22 {offsets = [0, 0], sizes = [8, 4], strides = [1, 1]} : vector<8x16xbf16> to vector<8x4xbf16>
    %33 = vector.extract_strided_slice %26 {offsets = [0, 0], sizes = [8, 4], strides = [1, 1]} : vector<8x16xbf16> to vector<8x4xbf16>
    %34 = vector.extract_strided_slice %30 {offsets = [0, 0], sizes = [8, 4], strides = [1, 1]} : vector<8x16xbf16> to vector<8x4xbf16>
    %35 = vector.extract_strided_slice %18 {offsets = [0, 4], sizes = [8, 4], strides = [1, 1]} : vector<8x16xbf16> to vector<8x4xbf16>
    %36 = vector.extract_strided_slice %22 {offsets = [0, 4], sizes = [8, 4], strides = [1, 1]} : vector<8x16xbf16> to vector<8x4xbf16>
    %37 = vector.extract_strided_slice %26 {offsets = [0, 4], sizes = [8, 4], strides = [1, 1]} : vector<8x16xbf16> to vector<8x4xbf16>
    %38 = vector.extract_strided_slice %30 {offsets = [0, 4], sizes = [8, 4], strides = [1, 1]} : vector<8x16xbf16> to vector<8x4xbf16>
    %39 = vector.extract_strided_slice %18 {offsets = [0, 8], sizes = [8, 4], strides = [1, 1]} : vector<8x16xbf16> to vector<8x4xbf16>
    %40 = vector.extract_strided_slice %22 {offsets = [0, 8], sizes = [8, 4], strides = [1, 1]} : vector<8x16xbf16> to vector<8x4xbf16>
    %41 = vector.extract_strided_slice %26 {offsets = [0, 8], sizes = [8, 4], strides = [1, 1]} : vector<8x16xbf16> to vector<8x4xbf16>
    %42 = vector.extract_strided_slice %30 {offsets = [0, 8], sizes = [8, 4], strides = [1, 1]} : vector<8x16xbf16> to vector<8x4xbf16>
    %43 = vector.extract_strided_slice %18 {offsets = [0, 12], sizes = [8, 4], strides = [1, 1]} : vector<8x16xbf16> to vector<8x4xbf16>
    %44 = vector.extract_strided_slice %22 {offsets = [0, 12], sizes = [8, 4], strides = [1, 1]} : vector<8x16xbf16> to vector<8x4xbf16>
    %45 = vector.extract_strided_slice %26 {offsets = [0, 12], sizes = [8, 4], strides = [1, 1]} : vector<8x16xbf16> to vector<8x4xbf16>
    %46 = vector.extract_strided_slice %30 {offsets = [0, 12], sizes = [8, 4], strides = [1, 1]} : vector<8x16xbf16> to vector<8x4xbf16>
    %47 = tpu.concatenate %31, %32, %35, %36, %39, %40, %43, %44 in 1 : vector<8x4xbf16>, vector<8x4xbf16>, vector<8x4xbf16>, vector<8x4xbf16>, vector<8x4xbf16>, vector<8x4xbf16>, vector<8x4xbf16>, vector<8x4xbf16> -> vector<8x32xbf16>
    %c0_8 = arith.constant 0 : index
    %c0_9 = arith.constant 0 : index
    %c0_10 = arith.constant 0 : index
    %48 = vector.load %arg6[%c0_8, %c0_9, %c0_10] : memref<1x8x32xbf16, #tpu.memory_space<vmem>>, vector<1x8x32xbf16>
    %49 = vector.shape_cast %48 : vector<1x8x32xbf16> to vector<8x32xbf16>
    %50 = vector.shape_cast %47 : vector<8x32xbf16> to vector<1x8x32xbf16>
    tpu.vector_store %arg6[%c0_8, %c0_9, %c0_10], %50 {strides = array<i32>} : memref<1x8x32xbf16, #tpu.memory_space<vmem>>, vector<1x8x32xbf16>,
    %51 = tpu.concatenate %33, %34, %37, %38, %41, %42, %45, %46 in 1 : vector<8x4xbf16>, vector<8x4xbf16>, vector<8x4xbf16>, vector<8x4xbf16>, vector<8x4xbf16>, vector<8x4xbf16>, vector<8x4xbf16>, vector<8x4xbf16> -> vector<8x32xbf16>
    %c0_11 = arith.constant 0 : index
    %c0_12 = arith.constant 0 : index
    %c0_13 = arith.constant 0 : index
    %52 = vector.load %arg7[%c0_11, %c0_12, %c0_13] : memref<1x8x32xbf16, #tpu.memory_space<vmem>>, vector<1x8x32xbf16>
    %53 = vector.shape_cast %52 : vector<1x8x32xbf16> to vector<8x32xbf16>
    %54 = vector.shape_cast %51 : vector<8x32xbf16> to vector<1x8x32xbf16>
    tpu.vector_store %arg7[%c0_11, %c0_12, %c0_13], %54 {strides = array<i32>} : memref<1x8x32xbf16, #tpu.memory_space<vmem>>, vector<1x8x32xbf16>,
    %55 = arith.truncf %6 : vector<8x32xf32> to vector<8x32xbf16>
    %c0_14 = arith.constant 0 : index
    %c0_15 = arith.constant 0 : index
    %c0_16 = arith.constant 0 : index
    %56 = vector.load %arg8[%c0_14, %c0_15, %c0_16] : memref<1x8x32xbf16, #tpu.memory_space<vmem>>, vector<1x8x32xbf16>
    %57 = vector.shape_cast %56 : vector<1x8x32xbf16> to vector<8x32xbf16>
    %58 = vector.shape_cast %55 : vector<8x32xbf16> to vector<1x8x32xbf16>
    tpu.vector_store %arg8[%c0_14, %c0_15, %c0_16], %58 {strides = array<i32>} : memref<1x8x32xbf16, #tpu.memory_space<vmem>>, vector<1x8x32xbf16>,
    return
  }
  func.func @transform_0(%arg0: i32, %arg1: i32) -> (i32, i32, i32) {
    %c0_i32 = arith.constant 0 : i32
    %c0_i32_0 = arith.constant 0 : i32
    return %arg1, %arg0, %c0_i32 : i32, i32, i32
  }
  func.func @transform_1(%arg0: i32, %arg1: i32) -> (i32, i32) {
    %c0_i32 = arith.constant 0 : i32
    %c0_i32_0 = arith.constant 0 : i32
    %c0_i32_1 = arith.constant 0 : i32
    return %c0_i32, %c0_i32_0 : i32, i32
  }
  func.func @transform_2(%arg0: i32, %arg1: i32) -> (i32, i32) {
    %c0_i32 = arith.constant 0 : i32
    %c0_i32_0 = arith.constant 0 : i32
    return %arg0, %c0_i32 : i32, i32
  }
  func.func @transform_3(%arg0: i32, %arg1: i32) -> (i32, i32) {
    %c0_i32 = arith.constant 0 : i32
    %c0_i32_0 = arith.constant 0 : i32
    return %arg0, %c0_i32 : i32, i32
  }
  func.func @transform_4(%arg0: i32, %arg1: i32) -> (i32, i32, i32) {
    %c0_i32 = arith.constant 0 : i32
    %c0_i32_0 = arith.constant 0 : i32
    return %arg1, %arg0, %c0_i32 : i32, i32, i32
  }
  func.func @transform_5(%arg0: i32, %arg1: i32) -> (i32, i32, i32) {
    %c0_i32 = arith.constant 0 : i32
    %c0_i32_0 = arith.constant 0 : i32
    return %arg1, %arg0, %c0_i32 : i32, i32, i32
  }
  func.func @transform_6(%arg0: i32, %arg1: i32) -> (i32, i32, i32) {
    %c0_i32 = arith.constant 0 : i32
    %c0_i32_0 = arith.constant 0 : i32
    return %arg1, %arg0, %c0_i32 : i32, i32, i32
  }
}

</mosaic_0001>

<llo_original>
// kernel: tpu_custom_call.1
$region0: #{tpu_custom_call.1}
  #allocation0 [shape = 'u32[]', space=smem, size = 0x4, offset = 0x4, fixed_abs, tag = 'smem constant byte address 0x4 - core index']
  #allocation1 [shape = 'u32[144,128]{1,0:T(1,128)}', space=vmem, size = 0x12000, scoped, tag = 'internal scratch']
  %s0 = inlined_call_operand.vmem [shape: bf16[2,8,32], index: 0, kind: input, shape index: {}]
  %s1 = inlined_call_operand.vmem [shape: bf16[96,32], index: 1, kind: input, shape index: {}]
  %s2 = inlined_call_operand.vmem [shape: f32[8,4], index: 2, kind: input, shape index: {}]
  %s3 = inlined_call_operand.vmem [shape: f32[8,4], index: 3, kind: input, shape index: {}]
  %s4 = inlined_call_operand.hbm [shape: bf16[2,8,32], index: 4, kind: output, shape index: {0}]
  %s5 = inlined_call_operand.hbm [shape: bf16[2,8,32], index: 5, kind: output, shape index: {1}]
  %s6 = inlined_call_operand.hbm [shape: bf16[2,8,32], index: 6, kind: output, shape index: {2}]
  %7 = xla_tuple %s4, %s5, %s6
  %s8 = sld [smem:[#allocation0]]
  $region65: #{tpu_custom_call.1} parent=0
    _
  %s10 = ssub.s32 1, %s8
  %s11 = scalar_select 0, %s10, %s8
  $region1: #{tpu_custom_call.1} parent=0
    #allocation2 [shape = 'u8[4096]{0}', space=vmem, size = 0x1000, scoped, tag = 'output window, operand 0']
    #allocation3 [shape = 's32[2]{0}', space=sflag, size = 0x8, scoped, tag = 'scoped memory for tpu_custom_call.1']
    #allocation4 [shape = 'u8[4096]{0}', space=vmem, size = 0x1000, scoped, tag = 'output window, operand 1']
    #allocation5 [shape = 's32[2]{0}', space=sflag, size = 0x8, scoped, tag = 'scoped memory for tpu_custom_call.1']
    #allocation6 [shape = 'u8[4096]{0}', space=vmem, size = 0x1000, scoped, tag = 'output window, operand 2']
    %12 = vsyncpa [#allocation3], 0
    %s13 = scalar_lea.sflag [#allocation3], 1
    %14 = vsyncpa %s13, 0
    %15 = vsyncpa [#allocation5], 0
    %s16 = scalar_lea.sflag [#allocation5], 1
    %17 = vsyncpa %s16, 0
    loop: start=0, step=1, limit=4
    $region2: #{tpu_custom_call.1} parent=1 // loop_pre_header
      _
    $region3: #{tpu_custom_call.1} parent=1 // loop_header
      %s19 = sphi 0, %s23
      %p20 = scmp.ge.s32.totalorder %s19, 4
      %s26 = sphi 0, %s38
      %s27 = sphi 0, %s34
      %s28 = sphi 0, %s26
      %s29 = sphi 0, %s27
      %s30 = sphi 0, %s28
      %s31 = sphi 0, %s29
      %s43 = sphi 0, %s45
      %s46 = sphi 0, %s43
      %s47 = sphi 0, %s46
      %s63 = sphi 0, %s47
      %s67 = sphi 0, %s67
      %s69 = sphi 0, %s67
      %s70 = sphi 0, %s69
      %s84 = sphi 0, %s70
      %s90 = sphi 0, %s92
      %s93 = sphi 0, %s90
      %s94 = sphi 0, %s93
      %s110 = sphi 0, %s94
      %s116 = sphi 0, %s118
      %s119 = sphi 0, %s116
      %s120 = sphi 0, %s119
      %s136 = sphi 0, %s120
      %s144 = sphi 0, %s146
      %s147 = sphi 0, %s144
      %s148 = sphi 0, %s147
      %s164 = sphi 0, %s148
      %s172 = sphi 0, %s174
      %s175 = sphi 0, %s172
      %s176 = sphi 0, %s175
      %s192 = sphi 0, %s176
      %s200 = sphi 0, %s202
      %s203 = sphi 0, %s200
      %s204 = sphi 0, %s203
      %s220 = sphi 0, %s204
    $region4: #{tpu_custom_call.1} parent=1 // loop_header_branch
      %22 = sbr.rel (%p20) target = $region8
    $region5: #{tpu_custom_call.1} parent=1 // loop_body
      %s24 = ssub.s32 %s19, 1
      %s25 = ssub.s32 %s19, 2
      %s32 = sadd.s32 1, %s27
      %p33 = scmp.ge.s32.totalorder %s32, 2
      %s34 = scalar_select %p33, 0, %s32
      %s35 = sadd.s32 1, %s26
      %s36 = scalar_select %p33, %s35, %s26
      %p37 = scmp.ge.s32.totalorder %s36, 1
      %s38 = scalar_select %p37, 0, %s36
      %s39 = ssub.s32 %s27, %s34
      %s40 = ssub.s32 %s26, %s38
      %s41 = sor.u32 %s39, %s40
      %p42 = scmp.eq.s32.totalorder %s41, 0
      %s44 = sadd.s32 %s43, 1
      %s45 = scalar_select %p42, %s43, %s44
      %p48 = pneg %p42
      %p49 = scmp.eq.s32.totalorder %s19, 1
      %p50 = por %p48, %p49
      %p51 = scmp.ne.s32.totalorder %s43, %s46
      %p52 = scmp.eq.s32.totalorder %s19, 0
      %p53 = por %p51, %p52
      %p54 = scmp.ne.s32.totalorder %s43, %s46
      %p55 = scmp.eq.s32.totalorder %s24, 1
      %p56 = por %p54, %p55
      %p57 = scmp.ne.s32.totalorder %s46, %s47
      %p58 = scmp.eq.s32.totalorder %s24, 0
      %p59 = por %p57, %p58
      %p60 = scmp.ne.s32.totalorder %s46, %s47
      %p61 = scmp.eq.s32.totalorder %s25, 1
      %p62 = por %p60, %p61
      %p64 = scmp.ne.s32.totalorder %s47, %s63
      %p65 = scmp.eq.s32.totalorder %s25, 0
      %p66 = por %p64, %p65
      %s68 = sadd.s32 %s67, 1
      %p71 = scmp.eq.s32.totalorder %s19, 1
      %p72 = scmp.ne.s32.totalorder %s67, %s69
      %p73 = scmp.eq.s32.totalorder %s19, 0
      %p74 = por %p72, %p73
      %p75 = scmp.ne.s32.totalorder %s67, %s69
      %p76 = scmp.eq.s32.totalorder %s24, 1
      %p77 = por %p75, %p76
      %p78 = scmp.ne.s32.totalorder %s69, %s70
      %p79 = scmp.eq.s32.totalorder %s24, 0
      %p80 = por %p78, %p79
      %p81 = scmp.ne.s32.totalorder %s69, %s70
      %p82 = scmp.eq.s32.totalorder %s25, 1
      %p83 = por %p81, %p82
      %p85 = scmp.ne.s32.totalorder %s70, %s84
      %p86 = scmp.eq.s32.totalorder %s25, 0
      %p87 = por %p85, %p86
      %s88 = ssub.s32 %s26, %s38
      %p89 = scmp.eq.s32.totalorder %s88, 0
      %s91 = sadd.s32 %s90, 1
      %s92 = scalar_select %p89, %s90, %s91
      %p95 = pneg %p89
      %p96 = scmp.eq.s32.totalorder %s19, 1
      %p97 = por %p95, %p96
      %p98 = scmp.ne.s32.totalorder %s90, %s93
      %p99 = scmp.eq.s32.totalorder %s19, 0
      %p100 = por %p98, %p99
      %p101 = scmp.ne.s32.totalorder %s90, %s93
      %p102 = scmp.eq.s32.totalorder %s24, 1
      %p103 = por %p101, %p102
      %p104 = scmp.ne.s32.totalorder %s93, %s94
      %p105 = scmp.eq.s32.totalorder %s24, 0
      %p106 = por %p104, %p105
      %p107 = scmp.ne.s32.totalorder %s93, %s94
      %p108 = scmp.eq.s32.totalorder %s25, 1
      %p109 = por %p107, %p108
      %p111 = scmp.ne.s32.totalorder %s94, %s110
      %p112 = scmp.eq.s32.totalorder %s25, 0
      %p113 = por %p111, %p112
      %s114 = ssub.s32 %s26, %s38
      %p115 = scmp.eq.s32.totalorder %s114, 0
      %s117 = sadd.s32 %s116, 1
      %s118 = scalar_select %p115, %s116, %s117
      %p121 = pneg %p115
      %p122 = scmp.eq.s32.totalorder %s19, 1
      %p123 = por %p121, %p122
      %p124 = scmp.ne.s32.totalorder %s116, %s119
      %p125 = scmp.eq.s32.totalorder %s19, 0
      %p126 = por %p124, %p125
      %p127 = scmp.ne.s32.totalorder %s116, %s119
      %p128 = scmp.eq.s32.totalorder %s24, 1
      %p129 = por %p127, %p128
      %p130 = scmp.ne.s32.totalorder %s119, %s120
      %p131 = scmp.eq.s32.totalorder %s24, 0
      %p132 = por %p130, %p131
      %p133 = scmp.ne.s32.totalorder %s119, %s120
      %p134 = scmp.eq.s32.totalorder %s25, 1
      %p135 = por %p133, %p134
      %p137 = scmp.ne.s32.totalorder %s120, %s136
      %p138 = scmp.eq.s32.totalorder %s25, 0
      %p139 = por %p137, %p138
      %s140 = ssub.s32 %s27, %s34
      %s141 = ssub.s32 %s26, %s38
      %s142 = sor.u32 %s140, %s141
      %p143 = scmp.eq.s32.totalorder %s142, 0
      %s145 = sadd.s32 %s144, 1
      %s146 = scalar_select %p143, %s144, %s145
      %p149 = pneg %p143
      %p150 = scmp.eq.s32.totalorder %s19, 1
      %p151 = por %p149, %p150
      %p152 = scmp.ne.s32.totalorder %s144, %s147
      %p153 = scmp.eq.s32.totalorder %s19, 0
      %p154 = por %p152, %p153
      %p155 = scmp.ne.s32.totalorder %s144, %s147
      %p156 = scmp.eq.s32.totalorder %s24, 1
      %p157 = por %p155, %p156
      %p158 = scmp.ne.s32.totalorder %s147, %s148
      %p159 = scmp.eq.s32.totalorder %s24, 0
      %p160 = por %p158, %p159
      %p161 = scmp.ne.s32.totalorder %s147, %s148
      %p162 = scmp.eq.s32.totalorder %s25, 1
      %p163 = por %p161, %p162
      %p165 = scmp.ne.s32.totalorder %s148, %s164
      %p166 = scmp.eq.s32.totalorder %s25, 0
      %p167 = por %p165, %p166
      %s168 = ssub.s32 %s27, %s34
      %s169 = ssub.s32 %s26, %s38
      %s170 = sor.u32 %s168, %s169
      %p171 = scmp.eq.s32.totalorder %s170, 0
      %s173 = sadd.s32 %s172, 1
      %s174 = scalar_select %p171, %s172, %s173
      %p177 = pneg %p171
      %p178 = scmp.eq.s32.totalorder %s19, 1
      %p179 = por %p177, %p178
      %p180 = scmp.ne.s32.totalorder %s172, %s175
      %p181 = scmp.eq.s32.totalorder %s19, 0
      %p182 = por %p180, %p181
      %p183 = scmp.ne.s32.totalorder %s172, %s175
      %p184 = scmp.eq.s32.totalorder %s24, 1
      %p185 = por %p183, %p184
      %p186 = scmp.ne.s32.totalorder %s175, %s176
      %p187 = scmp.eq.s32.totalorder %s24, 0
      %p188 = por %p186, %p187
      %p189 = scmp.ne.s32.totalorder %s175, %s176
      %p190 = scmp.eq.s32.totalorder %s25, 1
      %p191 = por %p189, %p190
      %p193 = scmp.ne.s32.totalorder %s176, %s192
      %p194 = scmp.eq.s32.totalorder %s25, 0
      %p195 = por %p193, %p194
      %s196 = ssub.s32 %s27, %s34
      %s197 = ssub.s32 %s26, %s38
      %s198 = sor.u32 %s196, %s197
      %p199 = scmp.eq.s32.totalorder %s198, 0
      %s201 = sadd.s32 %s200, 1
      %s202 = scalar_select %p199, %s200, %s201
      %p205 = pneg %p199
      %p206 = scmp.eq.s32.totalorder %s19, 1
      %p207 = por %p205, %p206
      %p208 = scmp.ne.s32.totalorder %s200, %s203
      %p209 = scmp.eq.s32.totalorder %s19, 0
      %p210 = por %p208, %p209
      %p211 = scmp.ne.s32.totalorder %s200, %s203
      %p212 = scmp.eq.s32.totalorder %s24, 1
      %p213 = por %p211, %p212
      %p214 = scmp.ne.s32.totalorder %s203, %s204
      %p215 = scmp.eq.s32.totalorder %s24, 0
      %p216 = por %p214, %p215
      %p217 = scmp.ne.s32.totalorder %s203, %s204
      %p218 = scmp.eq.s32.totalorder %s25, 1
      %p219 = por %p217, %p218
      %p221 = scmp.ne.s32.totalorder %s204, %s220
      %p222 = scmp.eq.s32.totalorder %s25, 0
      %p223 = por %p221, %p222
      %p224 = scmp.le.s32.totalorder 1, %s19
      %p225 = scmp.lt.s32.totalorder %s19, 3
      %p226 = pnand %p224, %p225
      %p227 = pneg %p226
      // Predicated region
      $region9: #{tpu_custom_call.1} parent=5 // pred_check
        _
      $region10: #{tpu_custom_call.1} parent=5 // pred_check_branch
        %229 = sbr.rel (%p226) target = $region12
      $region11: #{tpu_custom_call.1} parent=5 // pred_region
        %s230 = ssub.s32 %s19, 1
        // Predicated region
        $region13: #{tpu_custom_call.1} parent=11 // pred_check
          %p231 = pneg %p80
        $region14: #{tpu_custom_call.1} parent=11 // pred_check_branch
          %233 = sbr.rel (%p231) target = $region16
        $region15: #{tpu_custom_call.1} parent=11 // pred_region
          _
        $region16: #{tpu_custom_call.1} parent=11 // pred_fallthru
          _
        // Predicated region
        $region17: #{tpu_custom_call.1} parent=11 // pred_check
          %p234 = pneg %p106
        $region18: #{tpu_custom_call.1} parent=11 // pred_check_branch
          %236 = sbr.rel (%p234) target = $region20
        $region19: #{tpu_custom_call.1} parent=11 // pred_region
          %p237 = scmp.lt.s32.totalorder %s28, 0
          %s238 = scalar_select %p237, %s28, 0
          %s239 = smul.addr %s238, 8
          %s240 = scalar_lea.vmem %s2, %s239
        $region20: #{tpu_custom_call.1} parent=11 // pred_fallthru
          _
        // Predicated region
        $region21: #{tpu_custom_call.1} parent=11 // pred_check
          %p241 = pneg %p132
        $region22: #{tpu_custom_call.1} parent=11 // pred_check_branch
          %243 = sbr.rel (%p241) target = $region24
        $region23: #{tpu_custom_call.1} parent=11 // pred_region
          %p244 = scmp.lt.s32.totalorder %s28, 0
          %s245 = scalar_select %p244, %s28, 0
          %s246 = smul.addr %s245, 8
          %s247 = scalar_lea.vmem %s3, %s246
        $region24: #{tpu_custom_call.1} parent=11 // pred_fallthru
          _
      $region12: #{tpu_custom_call.1} parent=5 // pred_fallthru
        _
      %p248 = scmp.lt.s32.totalorder %s19, 2
      // Predicated region
      $region25: #{tpu_custom_call.1} parent=5 // pred_check
        %p249 = pneg %p248
      $region26: #{tpu_custom_call.1} parent=5 // pred_check_branch
        %251 = sbr.rel (%p249) target = $region28
      $region27: #{tpu_custom_call.1} parent=5 // pred_region
        // Predicated region
        $region29: #{tpu_custom_call.1} parent=27 // pred_check
          %p252 = pneg %p53
        $region30: #{tpu_custom_call.1} parent=27 // pred_check_branch
          %254 = sbr.rel (%p252) target = $region32
        $region31: #{tpu_custom_call.1} parent=27 // pred_region
          %p255 = scmp.lt.s32.totalorder %s27, 1
          %s256 = scalar_select %p255, %s27, 1
          %p257 = scmp.lt.s32.totalorder %s26, 0
          %s258 = scalar_select %p257, %s26, 0
          %s259 = sadd.s32 %s258, %s256
          %s260 = smul.addr %s259, 4
          %s261 = scalar_lea.vmem %s0, %s260
        $region32: #{tpu_custom_call.1} parent=27 // pred_fallthru
          _
      $region28: #{tpu_custom_call.1} parent=5 // pred_fallthru
        _
      %p262 = scmp.le.s32.totalorder 1, %s19
      %p263 = scmp.lt.s32.totalorder %s19, 3
      %p264 = pnand %p262, %p263
      %p265 = pneg %p264
      // Predicated region
      $region33: #{tpu_custom_call.1} parent=5 // pred_check
        _
      $region34: #{tpu_custom_call.1} parent=5 // pred_check_branch
        %267 = sbr.rel (%p264) target = $region36
      $region35: #{tpu_custom_call.1} parent=5 // pred_region
        %s268 = ssub.s32 %s19, 1
        %p269 = scmp.lt.s32.totalorder %s29, 1
        %s270 = scalar_select %p269, %s29, 1
        %p271 = scmp.lt.s32.totalorder %s28, 0
        %s272 = scalar_select %p271, %s28, 0
        %s273 = sadd.s32 %s272, %s270
        %s274 = smul.addr %s273, 4
        %s275 = scalar_lea.vmem %s0, %s274
        %p276 = pneg %p59
        %p277 = pneg %p56
        %p278 = pneg %p80
        %p279 = pneg %p77
        %p280 = scmp.lt.s32.totalorder %s28, 0
        %s281 = scalar_select %p280, %s28, 0
        %s282 = smul.addr %s281, 8
        %s283 = scalar_lea.vmem %s2, %s282
        %p284 = pneg %p106
        %p285 = pneg %p103
        %p286 = scmp.lt.s32.totalorder %s28, 0
        %s287 = scalar_select %p286, %s28, 0
        %s288 = smul.addr %s287, 8
        %s289 = scalar_lea.vmem %s3, %s288
        %p290 = pneg %p132
        %p291 = pneg %p129
        %p292 = pneg %p160
        %p293 = pneg %p157
        %s294 = sand.u32 %s147, 1
        %s295 = scalar_lea.sflag [#allocation3], %s294
        %s296 = sand.u32 %s147, 1
        %s297 = smul.addr %s296, 4
        %s298 = scalar_lea.vmem [#allocation2], %s297
        %p299 = pneg %p188
        %p300 = pneg %p185
        %s301 = sand.u32 %s24, 1
        %s302 = scalar_lea.sflag [#allocation5], %s301
        %s303 = sand.u32 %s175, 1
        %s304 = smul.addr %s303, 4
        %s305 = scalar_lea.vmem [#allocation4], %s304
        %p306 = pneg %p216
        %p307 = pneg %p213
        %s308 = sand.u32 %s24, 1
        %s309 = scalar_lea.sflag [#allocation5], %s308
        %s310 = sand.u32 %s203, 1
        %s311 = smul.addr %s310, 4
        %s312 = scalar_lea.vmem [#allocation6], %s311
        %p313 = scmp.lt.s32.totalorder %s29, 1
        %s314 = scalar_select %p313, %s29, 1
        %p315 = scmp.lt.s32.totalorder %s28, 0
        %s316 = scalar_select %p315, %s28, 0
        %s317 = sadd.s32 %s316, %s314
        %s318 = smul.addr %s317, 4
        %s319 = scalar_lea.vmem %s0, %s318
        %p320 = scmp.lt.s32.totalorder %s28, 0
        %s321 = scalar_select %p320, %s28, 0
        %s322 = smul.addr %s321, 8
        %s323 = scalar_lea.vmem %s2, %s322
        %p324 = scmp.lt.s32.totalorder %s28, 0
        %s325 = scalar_select %p324, %s28, 0
        %s326 = smul.addr %s325, 8
        %s327 = scalar_lea.vmem %s3, %s326
        %v329 = vld [vmem:[%s319] sm:$0xf]
        %v330 = vld [vmem:[%s1] sm:$0xf]
        %v331 = vld [vmem:[%s1 + $0x4] sm:$0xf]
        %v332 = vld [vmem:[%s1 + $0x8] sm:$0xf]
        %v333 = vld [vmem:[%s1 + $0xc] sm:$0xf]
        %v334 = vld [vmem:[%s1 + $0x10] sm:$0xf]
        %v335 = vld [vmem:[%s1 + $0x14] sm:$0xf]
        %v336 = vld [vmem:[%s1 + $0x18] sm:$0xf]
        %v337 = vld [vmem:[%s1 + $0x1c] sm:$0xf]
        %v338 = vld [vmem:[%s1 + $0x20] sm:$0xf]
        %v339 = vld [vmem:[%s1 + $0x24] sm:$0xf]
        %v340 = vld [vmem:[%s1 + $0x28] sm:$0xf]
        %v341 = vld [vmem:[%s1 + $0x2c] sm:$0xf]
        %v354 = vunpack.c.l.b16 %v330
        %v355 = vunpack.c.l.b16 %v331
        %v356 = vunpack.c.l.b16 %v332
        %v357 = vunpack.c.l.b16 %v333
        %v358 = vunpack.c.l.b16 %v334
        %v359 = vunpack.c.l.b16 %v335
        %v360 = vunpack.c.l.b16 %v336
        %v361 = vunpack.c.l.b16 %v337
        %v362 = vunpack.c.l.b16 %v338
        %v363 = vunpack.c.l.b16 %v339
        %v364 = vunpack.c.l.b16 %v340
        %v365 = vunpack.c.l.b16 %v341
        %v366 = vpack.c.b16 %v355, %v354
        %v367 = vpack.c.b16 %v357, %v356
        %v368 = vpack.c.b16 %v359, %v358
        %v369 = vpack.c.b16 %v361, %v360
        %v370 = vpack.c.b16 %v363, %v362
        %v371 = vpack.c.b16 %v365, %v364
        %vm372 = vcmask 261120
        %v374 = vsel %vm372, %v329, 0
        %v377 = vsel %vm372, %v366, 0
        %v380 = vsel %vm372, %v367, 0
        %v383 = vsel %vm372, %v368, 0
        %v386 = vsel %vm372, %v369, 0
        %v389 = vsel %vm372, %v370, 0
        %v392 = vsel %vm372, %v371, 0
        %394 = vmatprep.subr.bf16.mxu0 0
        %395 = vmatpush1.bf16.xpose.msra.mxu0 0
        %396 = vmatprep.subr.bf16.mxu0 0
        %397 = vmatpush1.bf16.xpose.msra.mxu0 0
        %398 = vmatprep.subr.bf16.mxu0 0
        %399 = vmatpush1.bf16.xpose.msra.mxu0 %v392
        %400 = vmatprep.subr.bf16.mxu0 0
        %401 = vmatpush1.bf16.xpose.msra.mxu0 %v389
        %402 = vmatprep.subr.bf16.mxu0 0
        %403 = vmatpush1.bf16.xpose.msra.mxu0 %v386
        %404 = vmatprep.subr.bf16.mxu0 0
        %405 = vmatpush1.bf16.xpose.msra.mxu0 %v383
        %406 = vmatprep.subr.bf16.mxu0 0
        %407 = vmatpush1.bf16.xpose.msra.mxu0 %v380
        %408 = vmatprep.subr.bf16.mxu0 0
        %409 = vmatpush1.bf16.xpose.msra.mxu0 %v377
        %410 = vmatprep.subr.bf16.mxu0 0
        %411 = vmatpush2.bf16.xpose.msra.mxu0 0
        %412 = vmatprep.subr.bf16.mxu0 0
        %413 = vmatpush2.bf16.xpose.msra.mxu0 0
        %414 = vmatprep.subr.bf16.mxu0 0
        %415 = vmatpush2.bf16.xpose.msra.mxu0 0
        %416 = vmatprep.subr.bf16.mxu0 0
        %417 = vmatpush2.bf16.xpose.msra.mxu0 0
        %418 = vmatprep.subr.bf16.mxu0 0
        %419 = vmatpush2.bf16.xpose.msra.mxu0 0
        %420 = vmatprep.subr.bf16.mxu0 0
        %421 = vmatpush2.bf16.xpose.msra.mxu0 0
        %422 = vmatprep.subr.bf16.mxu0 0
        %423 = vmatpush2.bf16.xpose.msra.mxu0 0
        %424 = vmatprep.subr.bf16.mxu0 0
        %425 = vmatpush2.bf16.xpose.msra.mxu0 0
        %426 = vmatprep.mubr.bf16.mxu0 0
        %427 = vmatmul.mubr.bf16.gmra.mxu0 %v374
        %v428 = vpop.f32.mrf.mxu0
        %v429 = vadd.f32 0.0, %v428
        %v430 = vpop.f32.mrf.mxu0
        %v431 = vpop.f32.mrf.mxu0
        %v432 = vpop.f32.mrf.mxu0
        %433 = vdwg.mxu0
        %v434 = vld [vmem:[%s323] sm:$0xff]
        %436 = vrot.lane.b32.xlu0 %v434, 4
        %v437 = vpop.permute.xlu0 %436
        %439 = vrot.lane.b32.xlu0 %v434, 8
        %v440 = vpop.permute.xlu0 %439
        %442 = vrot.lane.b32.xlu0 %v434, 12
        %v443 = vpop.permute.xlu0 %442
        %vm445 = vcmask 31744
        %v446 = vsel %vm445, %v434, %v437
        %vm447 = vcmask 64512
        %v448 = vsel %vm447, %v446, %v440
        %vm449 = vcmask 97280
        %v450 = vsel %vm449, %v448, %v443
        %v451 = vld [vmem:[%s327] sm:$0xff]
        %453 = vrot.lane.b32.xlu0 %v451, 4
        %v454 = vpop.permute.xlu0 %453
        %456 = vrot.lane.b32.xlu0 %v451, 8
        %v457 = vpop.permute.xlu0 %456
        %459 = vrot.lane.b32.xlu0 %v451, 12
        %v460 = vpop.permute.xlu0 %459
        %v462 = vsel %vm445, %v451, %v454
        %v463 = vsel %vm447, %v462, %v457
        %v464 = vsel %vm449, %v463, %v460
        %v465 = vmul.f32 %v429, %v450
        %467 = vrot.lane.b32.xlu0 %v464, 16
        %v468 = vpop.permute.xlu0 %467
        %v470 = vmul.f32 %v429, %v468
        %472 = vrot.lane.b32.xlu0 %v470, 112
        %v473 = vpop.permute.xlu0 %472
        %v475 = vsub.f32 %v465, %v473
        %v476 = vpack.c.bf16 %v475, %v475
        %v477 = vmul.f32 %v429, %v464
        %479 = vrot.lane.b32.xlu0 %v450, 16
        %v480 = vpop.permute.xlu0 %479
        %v482 = vmul.f32 %v429, %v480
        %484 = vrot.lane.b32.xlu0 %v482, 112
        %v485 = vpop.permute.xlu0 %484
        %v487 = vadd.f32 %v477, %v485
        %v488 = vpack.c.bf16 %v487, %v487
        %489 = vrot.lane.b32.xlu0 %v450, 32
        %v490 = vpop.permute.xlu0 %489
        %v492 = vmul.f32 %v429, %v490
        %493 = vrot.lane.b32.xlu0 %v464, 48
        %v494 = vpop.permute.xlu0 %493
        %v496 = vmul.f32 %v429, %v494
        %498 = vrot.lane.b32.xlu0 %v496, 112
        %v499 = vpop.permute.xlu0 %498
        %v501 = vsub.f32 %v492, %v499
        %v502 = vpack.c.bf16 %v501, %v501
        %503 = vrot.lane.b32.xlu0 %v464, 32
        %v504 = vpop.permute.xlu0 %503
        %v506 = vmul.f32 %v429, %v504
        %507 = vrot.lane.b32.xlu0 %v450, 48
        %v508 = vpop.permute.xlu0 %507
        %v510 = vmul.f32 %v429, %v508
        %512 = vrot.lane.b32.xlu0 %v510, 112
        %v513 = vpop.permute.xlu0 %512
        %v515 = vadd.f32 %v506, %v513
        %v516 = vpack.c.bf16 %v515, %v515
        %518 = vrot.lane.b32.xlu0 %v488, 4
        %v519 = vpop.permute.xlu0 %518
        %521 = vrot.lane.b32.xlu0 %v476, 4
        %v522 = vpop.permute.xlu0 %521
        %523 = vrot.lane.b32.xlu0 %v488, 8
        %v524 = vpop.permute.xlu0 %523
        %525 = vrot.lane.b32.xlu0 %v476, 8
        %v526 = vpop.permute.xlu0 %525
        %527 = vrot.lane.b32.xlu0 %v488, 12
        %v528 = vpop.permute.xlu0 %527
        %529 = vrot.lane.b32.xlu0 %v476, 12
        %v530 = vpop.permute.xlu0 %529
        %531 = vrot.lane.b32.xlu0 %v488, 16
        %v532 = vpop.permute.xlu0 %531
        %v535 = vsel %vm445, %v476, %v519
        %v537 = vsel %vm447, %v535, %v522
        %v539 = vsel %vm449, %v537, %v524
        %vm540 = vcmask 130048
        %v542 = vsel %vm540, %v539, %v526
        %vm543 = vcmask 162816
        %v545 = vsel %vm543, %v542, %v528
        %vm546 = vcmask 195584
        %v548 = vsel %vm546, %v545, %v530
        %vm549 = vcmask 228352
        %v551 = vsel %vm549, %v548, %v532
        %vm553 = vcmask 257024
        %554 = vst.msk [vmem:[%s298] sm:$0xf] %vm553, %v551
        %556 = vrot.lane.b32.xlu0 %v502, 96
        %v557 = vpop.permute.xlu0 %556
        %559 = vrot.lane.b32.xlu0 %v516, 100
        %v560 = vpop.permute.xlu0 %559
        %561 = vrot.lane.b32.xlu0 %v502, 100
        %v562 = vpop.permute.xlu0 %561
        %563 = vrot.lane.b32.xlu0 %v516, 104
        %v564 = vpop.permute.xlu0 %563
        %565 = vrot.lane.b32.xlu0 %v502, 104
        %v566 = vpop.permute.xlu0 %565
        %567 = vrot.lane.b32.xlu0 %v516, 108
        %v568 = vpop.permute.xlu0 %567
        %569 = vrot.lane.b32.xlu0 %v502, 108
        %v570 = vpop.permute.xlu0 %569
        %571 = vrot.lane.b32.xlu0 %v516, 112
        %v572 = vpop.permute.xlu0 %571
        %v575 = vsel %vm445, %v557, %v560
        %v577 = vsel %vm447, %v575, %v562
        %v579 = vsel %vm449, %v577, %v564
        %v581 = vsel %vm540, %v579, %v566
        %v583 = vsel %vm543, %v581, %v568
        %v585 = vsel %vm546, %v583, %v570
        %v587 = vsel %vm549, %v585, %v572
        %589 = vst.msk [vmem:[%s305] sm:$0xf] %vm553, %v587
        %v590 = vpack.c.bf16 %v429, %v429
        %v592 = vunpack.c.l.b16 %v590
        %v593 = vpack.c.b16 %v592, %v592
        %594 = vrot.lane.b32.xlu0 %v593, 64
        %v595 = vpop.permute.xlu0 %594
        %597 = vst.msk [vmem:[%s312] sm:$0xf] %vm553, %v595
        %s598 = sand.u32 %s147, 1
        %s599 = scalar_lea.sflag [#allocation3], %s598
        %s600 = sand.u32 %s147, 1
        %s601 = smul.addr %s600, 4
        %s602 = scalar_lea.vmem [#allocation2], %s601
        %s603 = sand.u32 %s24, 1
        %s604 = scalar_lea.sflag [#allocation5], %s603
        %s605 = sand.u32 %s175, 1
        %s606 = smul.addr %s605, 4
        %s607 = scalar_lea.vmem [#allocation4], %s606
        %s608 = sand.u32 %s24, 1
        %s609 = scalar_lea.sflag [#allocation5], %s608
        %s610 = sand.u32 %s203, 1
        %s611 = smul.addr %s610, 4
        %s612 = scalar_lea.vmem [#allocation6], %s611
        // Predicated region
        $region37: #{tpu_custom_call.1} parent=35 // pred_check
          %p613 = pneg %p157
        $region38: #{tpu_custom_call.1} parent=35 // pred_check_branch
          %615 = sbr.rel (%p613) target = $region40
        $region39: #{tpu_custom_call.1} parent=35 // pred_region
          %s617 = ssub.s32 64, 64
          %618 = vsyncadd %s599, %s617
          %s619 = sadd.s32 %s28, %s29
          %s620 = smul.addr %s619, 64
          %s621 = scalar_lea.hbm %s4, %s620
          %s623 = sshll.u32 %s602, 4
          %s624 = int_to_ptr.vmem [resolvable:$true] %s623
          %626 = dma.vmem_to_hbm [thread:$0]  %s624, 64, %s621, %s599
        $region40: #{tpu_custom_call.1} parent=35 // pred_fallthru
          _
        // Predicated region
        $region41: #{tpu_custom_call.1} parent=35 // pred_check
          %p627 = pneg %p185
        $region42: #{tpu_custom_call.1} parent=35 // pred_check_branch
          %629 = sbr.rel (%p627) target = $region44
        $region43: #{tpu_custom_call.1} parent=35 // pred_region
          %s631 = ssub.s32 64, 64
          %632 = vsyncadd %s604, %s631
          %s633 = sadd.s32 %s28, %s29
          %s634 = smul.addr %s633, 64
          %s635 = scalar_lea.hbm %s5, %s634
          %s637 = sshll.u32 %s607, 4
          %s638 = int_to_ptr.vmem [resolvable:$true] %s637
          %640 = dma.vmem_to_hbm [thread:$0]  %s638, 64, %s635, %s604
        $region44: #{tpu_custom_call.1} parent=35 // pred_fallthru
          _
        // Predicated region
        $region45: #{tpu_custom_call.1} parent=35 // pred_check
          %p641 = pneg %p213
        $region46: #{tpu_custom_call.1} parent=35 // pred_check_branch
          %643 = sbr.rel (%p641) target = $region48
        $region47: #{tpu_custom_call.1} parent=35 // pred_region
          %s645 = ssub.s32 64, 64
          %646 = vsyncadd %s609, %s645
          %s647 = sadd.s32 %s28, %s29
          %s648 = smul.addr %s647, 64
          %s649 = scalar_lea.hbm %s6, %s648
          %s651 = sshll.u32 %s612, 4
          %s652 = int_to_ptr.vmem [resolvable:$true] %s651
          %654 = dma.vmem_to_hbm [thread:$0]  %s652, 64, %s649, %s609
        $region48: #{tpu_custom_call.1} parent=35 // pred_fallthru
          _
      $region36: #{tpu_custom_call.1} parent=5 // pred_fallthru
        _
      %p655 = scmp.le.s32.totalorder 2, %s19
      // Predicated region
      $region49: #{tpu_custom_call.1} parent=5 // pred_check
        %p656 = pneg %p655
      $region50: #{tpu_custom_call.1} parent=5 // pred_check_branch
        %658 = sbr.rel (%p656) target = $region52
      $region51: #{tpu_custom_call.1} parent=5 // pred_region
        %s659 = ssub.s32 %s19, 2
        // Predicated region
        $region53: #{tpu_custom_call.1} parent=51 // pred_check
          %p660 = pneg %p163
        $region54: #{tpu_custom_call.1} parent=51 // pred_check_branch
          %662 = sbr.rel (%p660) target = $region56
        $region55: #{tpu_custom_call.1} parent=51 // pred_region
          %s663 = sand.u32 %s148, 1
          %s664 = scalar_lea.sflag [#allocation3], %s663
          %s665 = sand.u32 %s148, 1
          %s666 = smul.addr %s665, 4
          %s667 = scalar_lea.vmem [#allocation2], %s666
          %668 = dma.done %s664, 64
        $region56: #{tpu_custom_call.1} parent=51 // pred_fallthru
          _
        // Predicated region
        $region57: #{tpu_custom_call.1} parent=51 // pred_check
          %p669 = pneg %p191
        $region58: #{tpu_custom_call.1} parent=51 // pred_check_branch
          %671 = sbr.rel (%p669) target = $region60
        $region59: #{tpu_custom_call.1} parent=51 // pred_region
          %s672 = sand.u32 %s25, 1
          %s673 = scalar_lea.sflag [#allocation5], %s672
          %s674 = sand.u32 %s176, 1
          %s675 = smul.addr %s674, 4
          %s676 = scalar_lea.vmem [#allocation4], %s675
          %677 = dma.done %s673, 64
        $region60: #{tpu_custom_call.1} parent=51 // pred_fallthru
          _
        // Predicated region
        $region61: #{tpu_custom_call.1} parent=51 // pred_check
          %p678 = pneg %p219
        $region62: #{tpu_custom_call.1} parent=51 // pred_check_branch
          %680 = sbr.rel (%p678) target = $region64
        $region63: #{tpu_custom_call.1} parent=51 // pred_region
          %s681 = sand.u32 %s25, 1
          %s682 = scalar_lea.sflag [#allocation5], %s681
          %s683 = sand.u32 %s204, 1
          %s684 = smul.addr %s683, 4
          %s685 = scalar_lea.vmem [#allocation6], %s684
          %686 = dma.done %s682, 64
        $region64: #{tpu_custom_call.1} parent=51 // pred_fallthru
          _
      $region52: #{tpu_custom_call.1} parent=5 // pred_fallthru
        _
    $region6: #{tpu_custom_call.1} parent=1 // loop_footer
      %s23 = sadd.s32 1, %s19
    $region7: #{tpu_custom_call.1} parent=1 // loop_footer_branch
      %18 = sbr.rel target = $region3
    $region8: #{tpu_custom_call.1} parent=1 // loop_exit
      _
    %687 = vsyncpa [#allocation3], 1
    %s688 = scalar_lea.sflag [#allocation3], 1
    %689 = vsyncpa %s688, 1
    %690 = vsyncpa [#allocation5], 1
    %s691 = scalar_lea.sflag [#allocation5], 1
    %692 = vsyncpa %s691, 1

// kernel: tpu_custom_call.1
$region0: #{tpu_custom_call.1}
  #allocation0 [shape = 'u32[]', space=smem, size = 0x4, offset = 0x4, fixed_abs, tag = 'smem constant byte address 0x4 - core index']
  #allocation1 [shape = 'u32[144,128]{1,0:T(1,128)}', space=vmem, size = 0x12000, scoped, tag = 'internal scratch']
  %s0 = inlined_call_operand.vmem [shape: bf16[2,8,32], index: 0, kind: input, shape index: {}]
  %s1 = inlined_call_operand.vmem [shape: bf16[96,32], index: 1, kind: input, shape index: {}]
  %s2 = inlined_call_operand.vmem [shape: f32[8,4], index: 2, kind: input, shape index: {}]
  %s3 = inlined_call_operand.vmem [shape: f32[8,4], index: 3, kind: input, shape index: {}]
  %s4 = inlined_call_operand.hbm [shape: bf16[2,8,32], index: 4, kind: output, shape index: {0}]
  %s5 = inlined_call_operand.hbm [shape: bf16[2,8,32], index: 5, kind: output, shape index: {1}]
  %s6 = inlined_call_operand.hbm [shape: bf16[2,8,32], index: 6, kind: output, shape index: {2}]
  %7 = xla_tuple %s4, %s5, %s6
  %s8 = sld [smem:[#allocation0]]
  $region65: #{tpu_custom_call.1} parent=0
    _
  %s10 = ssub.s32 1, %s8
  %s11 = scalar_select 0, %s10, %s8
  $region1: #{tpu_custom_call.1} parent=0
    #allocation2 [shape = 'u8[4096]{0}', space=vmem, size = 0x1000, scoped, tag = 'output window, operand 0']
    #allocation3 [shape = 's32[2]{0}', space=sflag, size = 0x8, scoped, tag = 'scoped memory for tpu_custom_call.1']
    #allocation4 [shape = 'u8[4096]{0}', space=vmem, size = 0x1000, scoped, tag = 'output window, operand 1']
    #allocation5 [shape = 's32[2]{0}', space=sflag, size = 0x8, scoped, tag = 'scoped memory for tpu_custom_call.1']
    #allocation6 [shape = 'u8[4096]{0}', space=vmem, size = 0x1000, scoped, tag = 'output window, operand 2']
    %12 = vsyncpa [#allocation3], 0
    %s13 = scalar_lea.sflag [#allocation3], 1
    %14 = vsyncpa %s13, 0
    %15 = vsyncpa [#allocation5], 0
    %s16 = scalar_lea.sflag [#allocation5], 1
    %17 = vsyncpa %s16, 0
    loop: start=0, step=1, limit=4
    $region2: #{tpu_custom_call.1} parent=1 // loop_pre_header
      _
    $region3: #{tpu_custom_call.1} parent=1 // loop_header
      %s19 = sphi 0, %s23
      %p20 = scmp.ge.s32.totalorder %s19, 4
      %s26 = sphi 0, %s38
      %s27 = sphi 0, %s34
      %s28 = sphi 0, %s26
      %s29 = sphi 0, %s27
      %s30 = sphi 0, %s28
      %s31 = sphi 0, %s29
      %s43 = sphi 0, %s45
      %s46 = sphi 0, %s43
      %s47 = sphi 0, %s46
      %s63 = sphi 0, %s47
      %s67 = sphi 0, %s67
      %s69 = sphi 0, %s67
      %s70 = sphi 0, %s69
      %s84 = sphi 0, %s70
      %s90 = sphi 0, %s92
      %s93 = sphi 0, %s90
      %s94 = sphi 0, %s93
      %s110 = sphi 0, %s94
      %s116 = sphi 0, %s118
      %s119 = sphi 0, %s116
      %s120 = sphi 0, %s119
      %s136 = sphi 0, %s120
      %s144 = sphi 0, %s146
      %s147 = sphi 0, %s144
      %s148 = sphi 0, %s147
      %s164 = sphi 0, %s148
      %s172 = sphi 0, %s174
      %s175 = sphi 0, %s172
      %s176 = sphi 0, %s175
      %s192 = sphi 0, %s176
      %s200 = sphi 0, %s202
      %s203 = sphi 0, %s200
      %s204 = sphi 0, %s203
      %s220 = sphi 0, %s204
    $region4: #{tpu_custom_call.1} parent=1 // loop_header_branch
      %22 = sbr.rel (%p20) target = $region8
    $region5: #{tpu_custom_call.1} parent=1 // loop_body
      %s24 = ssub.s32 %s19, 1
      %s25 = ssub.s32 %s19, 2
      %s32 = sadd.s32 1, %s27
      %p33 = scmp.ge.s32.totalorder %s32, 2
      %s34 = scalar_select %p33, 0, %s32
      %s35 = sadd.s32 1, %s26
      %s36 = scalar_select %p33, %s35, %s26
      %p37 = scmp.ge.s32.totalorder %s36, 1
      %s38 = scalar_select %p37, 0, %s36
      %s39 = ssub.s32 %s27, %s34
      %s40 = ssub.s32 %s26, %s38
      %s41 = sor.u32 %s39, %s40
      %p42 = scmp.eq.s32.totalorder %s41, 0
      %s44 = sadd.s32 %s43, 1
      %s45 = scalar_select %p42, %s43, %s44
      %p48 = pneg %p42
      %p49 = scmp.eq.s32.totalorder %s19, 1
      %p50 = por %p48, %p49
      %p51 = scmp.ne.s32.totalorder %s43, %s46
      %p52 = scmp.eq.s32.totalorder %s19, 0
      %p53 = por %p51, %p52
      %p54 = scmp.ne.s32.totalorder %s43, %s46
      %p55 = scmp.eq.s32.totalorder %s24, 1
      %p56 = por %p54, %p55
      %p57 = scmp.ne.s32.totalorder %s46, %s47
      %p58 = scmp.eq.s32.totalorder %s24, 0
      %p59 = por %p57, %p58
      %p60 = scmp.ne.s32.totalorder %s46, %s47
      %p61 = scmp.eq.s32.totalorder %s25, 1
      %p62 = por %p60, %p61
      %p64 = scmp.ne.s32.totalorder %s47, %s63
      %p65 = scmp.eq.s32.totalorder %s25, 0
      %p66 = por %p64, %p65
      %s68 = sadd.s32 %s67, 1
      %p71 = scmp.eq.s32.totalorder %s19, 1
      %p72 = scmp.ne.s32.totalorder %s67, %s69
      %p73 = scmp.eq.s32.totalorder %s19, 0
      %p74 = por %p72, %p73
      %p75 = scmp.ne.s32.totalorder %s67, %s69
      %p76 = scmp.eq.s32.totalorder %s24, 1
      %p77 = por %p75, %p76
      %p78 = scmp.ne.s32.totalorder %s69, %s70
      %p79 = scmp.eq.s32.totalorder %s24, 0
      %p80 = por %p78, %p79
      %p81 = scmp.ne.s32.totalorder %s69, %s70
      %p82 = scmp.eq.s32.totalorder %s25, 1
      %p83 = por %p81, %p82
      %p85 = scmp.ne.s32.totalorder %s70, %s84
      %p86 = scmp.eq.s32.totalorder %s25, 0
      %p87 = por %p85, %p86
      %s88 = ssub.s32 %s26, %s38
      %p89 = scmp.eq.s32.totalorder %s88, 0
      %s91 = sadd.s32 %s90, 1
      %s92 = scalar_select %p89, %s90, %s91
      %p95 = pneg %p89
      %p96 = scmp.eq.s32.totalorder %s19, 1
      %p97 = por %p95, %p96
      %p98 = scmp.ne.s32.totalorder %s90, %s93
      %p99 = scmp.eq.s32.totalorder %s19, 0
      %p100 = por %p98, %p99
      %p101 = scmp.ne.s32.totalorder %s90, %s93
      %p102 = scmp.eq.s32.totalorder %s24, 1
      %p103 = por %p101, %p102
      %p104 = scmp.ne.s32.totalorder %s93, %s94
      %p105 = scmp.eq.s32.totalorder %s24, 0
      %p106 = por %p104, %p105
      %p107 = scmp.ne.s32.totalorder %s93, %s94
      %p108 = scmp.eq.s32.totalorder %s25, 1
      %p109 = por %p107, %p108
      %p111 = scmp.ne.s32.totalorder %s94, %s110
      %p112 = scmp.eq.s32.totalorder %s25, 0
      %p113 = por %p111, %p112
      %s114 = ssub.s32 %s26, %s38
      %p115 = scmp.eq.s32.totalorder %s114, 0
      %s117 = sadd.s32 %s116, 1
      %s118 = scalar_select %p115, %s116, %s117
      %p121 = pneg %p115
      %p122 = scmp.eq.s32.totalorder %s19, 1
      %p123 = por %p121, %p122
      %p124 = scmp.ne.s32.totalorder %s116, %s119
      %p125 = scmp.eq.s32.totalorder %s19, 0
      %p126 = por %p124, %p125
      %p127 = scmp.ne.s32.totalorder %s116, %s119
      %p128 = scmp.eq.s32.totalorder %s24, 1
      %p129 = por %p127, %p128
      %p130 = scmp.ne.s32.totalorder %s119, %s120
      %p131 = scmp.eq.s32.totalorder %s24, 0
      %p132 = por %p130, %p131
      %p133 = scmp.ne.s32.totalorder %s119, %s120
      %p134 = scmp.eq.s32.totalorder %s25, 1
      %p135 = por %p133, %p134
      %p137 = scmp.ne.s32.totalorder %s120, %s136
      %p138 = scmp.eq.s32.totalorder %s25, 0
      %p139 = por %p137, %p138
      %s140 = ssub.s32 %s27, %s34
      %s141 = ssub.s32 %s26, %s38
      %s142 = sor.u32 %s140, %s141
      %p143 = scmp.eq.s32.totalorder %s142, 0
      %s145 = sadd.s32 %s144, 1
      %s146 = scalar_select %p143, %s144, %s145
      %p149 = pneg %p143
      %p150 = scmp.eq.s32.totalorder %s19, 1
      %p151 = por %p149, %p150
      %p152 = scmp.ne.s32.totalorder %s144, %s147
      %p153 = scmp.eq.s32.totalorder %s19, 0
      %p154 = por %p152, %p153
      %p155 = scmp.ne.s32.totalorder %s144, %s147
      %p156 = scmp.eq.s32.totalorder %s24, 1
      %p157 = por %p155, %p156
      %p158 = scmp.ne.s32.totalorder %s147, %s148
      %p159 = scmp.eq.s32.totalorder %s24, 0
      %p160 = por %p158, %p159
      %p161 = scmp.ne.s32.totalorder %s147, %s148
      %p162 = scmp.eq.s32.totalorder %s25, 1
      %p163 = por %p161, %p162
      %p165 = scmp.ne.s32.totalorder %s148, %s164
      %p166 = scmp.eq.s32.totalorder %s25, 0
      %p167 = por %p165, %p166
      %s168 = ssub.s32 %s27, %s34
      %s169 = ssub.s32 %s26, %s38
      %s170 = sor.u32 %s168, %s169
      %p171 = scmp.eq.s32.totalorder %s170, 0
      %s173 = sadd.s32 %s172, 1
      %s174 = scalar_select %p171, %s172, %s173
      %p177 = pneg %p171
      %p178 = scmp.eq.s32.totalorder %s19, 1
      %p179 = por %p177, %p178
      %p180 = scmp.ne.s32.totalorder %s172, %s175
      %p181 = scmp.eq.s32.totalorder %s19, 0
      %p182 = por %p180, %p181
      %p183 = scmp.ne.s32.totalorder %s172, %s175
      %p184 = scmp.eq.s32.totalorder %s24, 1
      %p185 = por %p183, %p184
      %p186 = scmp.ne.s32.totalorder %s175, %s176
      %p187 = scmp.eq.s32.totalorder %s24, 0
      %p188 = por %p186, %p187
      %p189 = scmp.ne.s32.totalorder %s175, %s176
      %p190 = scmp.eq.s32.totalorder %s25, 1
      %p191 = por %p189, %p190
      %p193 = scmp.ne.s32.totalorder %s176, %s192
      %p194 = scmp.eq.s32.totalorder %s25, 0
      %p195 = por %p193, %p194
      %s196 = ssub.s32 %s27, %s34
      %s197 = ssub.s32 %s26, %s38
      %s198 = sor.u32 %s196, %s197
      %p199 = scmp.eq.s32.totalorder %s198, 0
      %s201 = sadd.s32 %s200, 1
      %s202 = scalar_select %p199, %s200, %s201
      %p205 = pneg %p199
      %p206 = scmp.eq.s32.totalorder %s19, 1
      %p207 = por %p205, %p206
      %p208 = scmp.ne.s32.totalorder %s200, %s203
      %p209 = scmp.eq.s32.totalorder %s19, 0
      %p210 = por %p208, %p209
      %p211 = scmp.ne.s32.totalorder %s200, %s203
      %p212 = scmp.eq.s32.totalorder %s24, 1
      %p213 = por %p211, %p212
      %p214 = scmp.ne.s32.totalorder %s203, %s204
      %p215 = scmp.eq.s32.totalorder %s24, 0
      %p216 = por %p214, %p215
      %p217 = scmp.ne.s32.totalorder %s203, %s204
      %p218 = scmp.eq.s32.totalorder %s25, 1
      %p219 = por %p217, %p218
      %p221 = scmp.ne.s32.totalorder %s204, %s220
      %p222 = scmp.eq.s32.totalorder %s25, 0
      %p223 = por %p221, %p222
      %p224 = scmp.le.s32.totalorder 1, %s19
      %p225 = scmp.lt.s32.totalorder %s19, 3
      %p226 = pnand %p224, %p225
      %p227 = pneg %p226
      // Predicated region
      $region9: #{tpu_custom_call.1} parent=5 // pred_check
        _
      $region10: #{tpu_custom_call.1} parent=5 // pred_check_branch
        %229 = sbr.rel (%p226) target = $region12
      $region11: #{tpu_custom_call.1} parent=5 // pred_region
        %s230 = ssub.s32 %s19, 1
        // Predicated region
        $region13: #{tpu_custom_call.1} parent=11 // pred_check
          %p231 = pneg %p80
        $region14: #{tpu_custom_call.1} parent=11 // pred_check_branch
          %233 = sbr.rel (%p231) target = $region16
        $region15: #{tpu_custom_call.1} parent=11 // pred_region
          _
        $region16: #{tpu_custom_call.1} parent=11 // pred_fallthru
          _
        // Predicated region
        $region17: #{tpu_custom_call.1} parent=11 // pred_check
          %p234 = pneg %p106
        $region18: #{tpu_custom_call.1} parent=11 // pred_check_branch
          %236 = sbr.rel (%p234) target = $region20
        $region19: #{tpu_custom_call.1} parent=11 // pred_region
          %p237 = scmp.lt.s32.totalorder %s28, 0
          %s238 = scalar_select %p237, %s28, 0
          %s239 = smul.addr %s238, 8
          %s240 = scalar_lea.vmem %s2, %s239
        $region20: #{tpu_custom_call.1} parent=11 // pred_fallthru
          _
        // Predicated region
        $region21: #{tpu_custom_call.1} parent=11 // pred_check
          %p241 = pneg %p132
        $region22: #{tpu_custom_call.1} parent=11 // pred_check_branch
          %243 = sbr.rel (%p241) target = $region24
        $region23: #{tpu_custom_call.1} parent=11 // pred_region
          %p244 = scmp.lt.s32.totalorder %s28, 0
          %s245 = scalar_select %p244, %s28, 0
          %s246 = smul.addr %s245, 8
          %s247 = scalar_lea.vmem %s3, %s246
        $region24: #{tpu_custom_call.1} parent=11 // pred_fallthru
          _
      $region12: #{tpu_custom_call.1} parent=5 // pred_fallthru
        _
      %p248 = scmp.lt.s32.totalorder %s19, 2
      // Predicated region
      $region25: #{tpu_custom_call.1} parent=5 // pred_check
        %p249 = pneg %p248
      $region26: #{tpu_custom_call.1} parent=5 // pred_check_branch
        %251 = sbr.rel (%p249) target = $region28
      $region27: #{tpu_custom_call.1} parent=5 // pred_region
        // Predicated region
        $region29: #{tpu_custom_call.1} parent=27 // pred_check
          %p252 = pneg %p53
        $region30: #{tpu_custom_call.1} parent=27 // pred_check_branch
          %254 = sbr.rel (%p252) target = $region32
        $region31: #{tpu_custom_call.1} parent=27 // pred_region
          %p255 = scmp.lt.s32.totalorder %s27, 1
          %s256 = scalar_select %p255, %s27, 1
          %p257 = scmp.lt.s32.totalorder %s26, 0
          %s258 = scalar_select %p257, %s26, 0
          %s259 = sadd.s32 %s258, %s256
          %s260 = smul.addr %s259, 4
          %s261 = scalar_lea.vmem %s0, %s260
        $region32: #{tpu_custom_call.1} parent=27 // pred_fallthru
          _
      $region28: #{tpu_custom_call.1} parent=5 // pred_fallthru
        _
      %p262 = scmp.le.s32.totalorder 1, %s19
      %p263 = scmp.lt.s32.totalorder %s19, 3
      %p264 = pnand %p262, %p263
      %p265 = pneg %p264
      // Predicated region
      $region33: #{tpu_custom_call.1} parent=5 // pred_check
        _
      $region34: #{tpu_custom_call.1} parent=5 // pred_check_branch
        %267 = sbr.rel (%p264) target = $region36
      $region35: #{tpu_custom_call.1} parent=5 // pred_region
        %s268 = ssub.s32 %s19, 1
        %p269 = scmp.lt.s32.totalorder %s29, 1
        %s270 = scalar_select %p269, %s29, 1
        %p271 = scmp.lt.s32.totalorder %s28, 0
        %s272 = scalar_select %p271, %s28, 0
        %s273 = sadd.s32 %s272, %s270
        %s274 = smul.addr %s273, 4
        %s275 = scalar_lea.vmem %s0, %s274
        %p276 = pneg %p59
        %p277 = pneg %p56
        %p278 = pneg %p80
        %p279 = pneg %p77
        %p280 = scmp.lt.s32.totalorder %s28, 0
        %s281 = scalar_select %p280, %s28, 0
        %s282 = smul.addr %s281, 8
        %s283 = scalar_lea.vmem %s2, %s282
        %p284 = pneg %p106
        %p285 = pneg %p103
        %p286 = scmp.lt.s32.totalorder %s28, 0
        %s287 = scalar_select %p286, %s28, 0
        %s288 = smul.addr %s287, 8
        %s289 = scalar_lea.vmem %s3, %s288
        %p290 = pneg %p132
        %p291 = pneg %p129
        %p292 = pneg %p160
        %p293 = pneg %p157
        %s294 = sand.u32 %s147, 1
        %s295 = scalar_lea.sflag [#allocation3], %s294
        %s296 = sand.u32 %s147, 1
        %s297 = smul.addr %s296, 4
        %s298 = scalar_lea.vmem [#allocation2], %s297
        %p299 = pneg %p188
        %p300 = pneg %p185
        %s301 = sand.u32 %s24, 1
        %s302 = scalar_lea.sflag [#allocation5], %s301
        %s303 = sand.u32 %s175, 1
        %s304 = smul.addr %s303, 4
        %s305 = scalar_lea.vmem [#allocation4], %s304
        %p306 = pneg %p216
        %p307 = pneg %p213
        %s308 = sand.u32 %s24, 1
        %s309 = scalar_lea.sflag [#allocation5], %s308
        %s310 = sand.u32 %s203, 1
        %s311 = smul.addr %s310, 4
        %s312 = scalar_lea.vmem [#allocation6], %s311
        %p313 = scmp.lt.s32.totalorder %s29, 1
        %s314 = scalar_select %p313, %s29, 1
        %p315 = scmp.lt.s32.totalorder %s28, 0
        %s316 = scalar_select %p315, %s28, 0
        %s317 = sadd.s32 %s316, %s314
        %s318 = smul.addr %s317, 4
        %s319 = scalar_lea.vmem %s0, %s318
        %p320 = scmp.lt.s32.totalorder %s28, 0
        %s321 = scalar_select %p320, %s28, 0
        %s322 = smul.addr %s321, 8
        %s323 = scalar_lea.vmem %s2, %s322
        %p324 = scmp.lt.s32.totalorder %s28, 0
        %s325 = scalar_select %p324, %s28, 0
        %s326 = smul.addr %s325, 8
        %s327 = scalar_lea.vmem %s3, %s326
        %v329 = vld [vmem:[%s319] sm:$0xf]
        %v330 = vld [vmem:[%s1] sm:$0xf]
        %v331 = vld [vmem:[%s1 + $0x4] sm:$0xf]
        %v332 = vld [vmem:[%s1 + $0x8] sm:$0xf]
        %v333 = vld [vmem:[%s1 + $0xc] sm:$0xf]
        %v334 = vld [vmem:[%s1 + $0x10] sm:$0xf]
        %v335 = vld [vmem:[%s1 + $0x14] sm:$0xf]
        %v336 = vld [vmem:[%s1 + $0x18] sm:$0xf]
        %v337 = vld [vmem:[%s1 + $0x1c] sm:$0xf]
        %v338 = vld [vmem:[%s1 + $0x20] sm:$0xf]
        %v339 = vld [vmem:[%s1 + $0x24] sm:$0xf]
        %v340 = vld [vmem:[%s1 + $0x28] sm:$0xf]
        %v341 = vld [vmem:[%s1 + $0x2c] sm:$0xf]
        %v354 = vunpack.c.l.b16 %v330
        %v355 = vunpack.c.l.b16 %v331
        %v356 = vunpack.c.l.b16 %v332
        %v357 = vunpack.c.l.b16 %v333
        %v358 = vunpack.c.l.b16 %v334
        %v359 = vunpack.c.l.b16 %v335
        %v360 = vunpack.c.l.b16 %v336
        %v361 = vunpack.c.l.b16 %v337
        %v362 = vunpack.c.l.b16 %v338
        %v363 = vunpack.c.l.b16 %v339
        %v364 = vunpack.c.l.b16 %v340
        %v365 = vunpack.c.l.b16 %v341
        %v366 = vpack.c.b16 %v355, %v354
        %v367 = vpack.c.b16 %v357, %v356
        %v368 = vpack.c.b16 %v359, %v358
        %v369 = vpack.c.b16 %v361, %v360
        %v370 = vpack.c.b16 %v363, %v362
        %v371 = vpack.c.b16 %v365, %v364
        %vm372 = vcmask 261120
        %v374 = vsel %vm372, %v329, 0
        %v377 = vsel %vm372, %v366, 0
        %v380 = vsel %vm372, %v367, 0
        %v383 = vsel %vm372, %v368, 0
        %v386 = vsel %vm372, %v369, 0
        %v389 = vsel %vm372, %v370, 0
        %v392 = vsel %vm372, %v371, 0
        %394 = vmatprep.subr.bf16.mxu0 0
        %395 = vmatpush1.bf16.xpose.msra.mxu0 0
        %396 = vmatprep.subr.bf16.mxu0 0
        %397 = vmatpush1.bf16.xpose.msra.mxu0 0
        %398 = vmatprep.subr.bf16.mxu0 0
        %399 = vmatpush1.bf16.xpose.msra.mxu0 %v392
        %400 = vmatprep.subr.bf16.mxu0 0
        %401 = vmatpush1.bf16.xpose.msra.mxu0 %v389
        %402 = vmatprep.subr.bf16.mxu0 0
        %403 = vmatpush1.bf16.xpose.msra.mxu0 %v386
        %404 = vmatprep.subr.bf16.mxu0 0
        %405 = vmatpush1.bf16.xpose.msra.mxu0 %v383
        %406 = vmatprep.subr.bf16.mxu0 0
        %407 = vmatpush1.bf16.xpose.msra.mxu0 %v380
        %408 = vmatprep.subr.bf16.mxu0 0
        %409 = vmatpush1.bf16.xpose.msra.mxu0 %v377
        %410 = vmatprep.subr.bf16.mxu0 0
        %411 = vmatpush2.bf16.xpose.msra.mxu0 0
        %412 = vmatprep.subr.bf16.mxu0 0
        %413 = vmatpush2.bf16.xpose.msra.mxu0 0
        %414 = vmatprep.subr.bf16.mxu0 0
        %415 = vmatpush2.bf16.xpose.msra.mxu0 0
        %416 = vmatprep.subr.bf16.mxu0 0
        %417 = vmatpush2.bf16.xpose.msra.mxu0 0
        %418 = vmatprep.subr.bf16.mxu0 0
        %419 = vmatpush2.bf16.xpose.msra.mxu0 0
        %420 = vmatprep.subr.bf16.mxu0 0
        %421 = vmatpush2.bf16.xpose.msra.mxu0 0
        %422 = vmatprep.subr.bf16.mxu0 0
        %423 = vmatpush2.bf16.xpose.msra.mxu0 0
        %424 = vmatprep.subr.bf16.mxu0 0
        %425 = vmatpush2.bf16.xpose.msra.mxu0 0
        %426 = vmatprep.mubr.bf16.mxu0 0
        %427 = vmatmul.mubr.bf16.gmra.mxu0 %v374
        %v428 = vpop.f32.mrf.mxu0
        %v429 = vadd.f32 0.0, %v428
        %v430 = vpop.f32.mrf.mxu0
        %v431 = vpop.f32.mrf.mxu0
        %v432 = vpop.f32.mrf.mxu0
        %433 = vdwg.mxu0
        %v434 = vld [vmem:[%s323] sm:$0xff]
        %436 = vrot.lane.b32.xlu0 %v434, 4
        %v437 = vpop.permute.xlu0 %436
        %439 = vrot.lane.b32.xlu0 %v434, 8
        %v440 = vpop.permute.xlu0 %439
        %442 = vrot.lane.b32.xlu0 %v434, 12
        %v443 = vpop.permute.xlu0 %442
        %vm445 = vcmask 31744
        %v446 = vsel %vm445, %v434, %v437
        %vm447 = vcmask 64512
        %v448 = vsel %vm447, %v446, %v440
        %vm449 = vcmask 97280
        %v450 = vsel %vm449, %v448, %v443
        %v451 = vld [vmem:[%s327] sm:$0xff]
        %453 = vrot.lane.b32.xlu0 %v451, 4
        %v454 = vpop.permute.xlu0 %453
        %456 = vrot.lane.b32.xlu0 %v451, 8
        %v457 = vpop.permute.xlu0 %456
        %459 = vrot.lane.b32.xlu0 %v451, 12
        %v460 = vpop.permute.xlu0 %459
        %v462 = vsel %vm445, %v451, %v454
        %v463 = vsel %vm447, %v462, %v457
        %v464 = vsel %vm449, %v463, %v460
        %v465 = vmul.f32 %v429, %v450
        %467 = vrot.lane.b32.xlu0 %v464, 16
        %v468 = vpop.permute.xlu0 %467
        %v470 = vmul.f32 %v429, %v468
        %472 = vrot.lane.b32.xlu0 %v470, 112
        %v473 = vpop.permute.xlu0 %472
        %v475 = vsub.f32 %v465, %v473
        %v476 = vpack.c.bf16 %v475, %v475
        %v477 = vmul.f32 %v429, %v464
        %479 = vrot.lane.b32.xlu0 %v450, 16
        %v480 = vpop.permute.xlu0 %479
        %v482 = vmul.f32 %v429, %v480
        %484 = vrot.lane.b32.xlu0 %v482, 112
        %v485 = vpop.permute.xlu0 %484
        %v487 = vadd.f32 %v477, %v485
        %v488 = vpack.c.bf16 %v487, %v487
        %489 = vrot.lane.b32.xlu0 %v450, 32
        %v490 = vpop.permute.xlu0 %489
        %v492 = vmul.f32 %v429, %v490
        %493 = vrot.lane.b32.xlu0 %v464, 48
        %v494 = vpop.permute.xlu0 %493
        %v496 = vmul.f32 %v429, %v494
        %498 = vrot.lane.b32.xlu0 %v496, 112
        %v499 = vpop.permute.xlu0 %498
        %v501 = vsub.f32 %v492, %v499
        %v502 = vpack.c.bf16 %v501, %v501
        %503 = vrot.lane.b32.xlu0 %v464, 32
        %v504 = vpop.permute.xlu0 %503
        %v506 = vmul.f32 %v429, %v504
        %507 = vrot.lane.b32.xlu0 %v450, 48
        %v508 = vpop.permute.xlu0 %507
        %v510 = vmul.f32 %v429, %v508
        %512 = vrot.lane.b32.xlu0 %v510, 112
        %v513 = vpop.permute.xlu0 %512
        %v515 = vadd.f32 %v506, %v513
        %v516 = vpack.c.bf16 %v515, %v515
        %518 = vrot.lane.b32.xlu0 %v488, 4
        %v519 = vpop.permute.xlu0 %518
        %521 = vrot.lane.b32.xlu0 %v476, 4
        %v522 = vpop.permute.xlu0 %521
        %523 = vrot.lane.b32.xlu0 %v488, 8
        %v524 = vpop.permute.xlu0 %523
        %525 = vrot.lane.b32.xlu0 %v476, 8
        %v526 = vpop.permute.xlu0 %525
        %527 = vrot.lane.b32.xlu0 %v488, 12
        %v528 = vpop.permute.xlu0 %527
        %529 = vrot.lane.b32.xlu0 %v476, 12
        %v530 = vpop.permute.xlu0 %529
        %531 = vrot.lane.b32.xlu0 %v488, 16
        %v532 = vpop.permute.xlu0 %531
        %v535 = vsel %vm445, %v476, %v519
        %v537 = vsel %vm447, %v535, %v522
        %v539 = vsel %vm449, %v537, %v524
        %vm540 = vcmask 130048
        %v542 = vsel %vm540, %v539, %v526
        %vm543 = vcmask 162816
        %v545 = vsel %vm543, %v542, %v528
        %vm546 = vcmask 195584
        %v548 = vsel %vm546, %v545, %v530
        %vm549 = vcmask 228352
        %v551 = vsel %vm549, %v548, %v532
        %vm553 = vcmask 257024
        %554 = vst.msk [vmem:[%s298] sm:$0xf] %vm553, %v551
        %556 = vrot.lane.b32.xlu0 %v502, 96
        %v557 = vpop.permute.xlu0 %556
        %559 = vrot.lane.b32.xlu0 %v516, 100
        %v560 = vpop.permute.xlu0 %559
        %561 = vrot.lane.b32.xlu0 %v502, 100
        %v562 = vpop.permute.xlu0 %561
        %563 = vrot.lane.b32.xlu0 %v516, 104
        %v564 = vpop.permute.xlu0 %563
        %565 = vrot.lane.b32.xlu0 %v502, 104
        %v566 = vpop.permute.xlu0 %565
        %567 = vrot.lane.b32.xlu0 %v516, 108
        %v568 = vpop.permute.xlu0 %567
        %569 = vrot.lane.b32.xlu0 %v502, 108
        %v570 = vpop.permute.xlu0 %569
        %571 = vrot.lane.b32.xlu0 %v516, 112
        %v572 = vpop.permute.xlu0 %571
        %v575 = vsel %vm445, %v557, %v560
        %v577 = vsel %vm447, %v575, %v562
        %v579 = vsel %vm449, %v577, %v564
        %v581 = vsel %vm540, %v579, %v566
        %v583 = vsel %vm543, %v581, %v568
        %v585 = vsel %vm546, %v583, %v570
        %v587 = vsel %vm549, %v585, %v572
        %589 = vst.msk [vmem:[%s305] sm:$0xf] %vm553, %v587
        %v590 = vpack.c.bf16 %v429, %v429
        %v592 = vunpack.c.l.b16 %v590
        %v593 = vpack.c.b16 %v592, %v592
        %594 = vrot.lane.b32.xlu0 %v593, 64
        %v595 = vpop.permute.xlu0 %594
        %597 = vst.msk [vmem:[%s312] sm:$0xf] %vm553, %v595
        %s598 = sand.u32 %s147, 1
        %s599 = scalar_lea.sflag [#allocation3], %s598
        %s600 = sand.u32 %s147, 1
        %s601 = smul.addr %s600, 4
        %s602 = scalar_lea.vmem [#allocation2], %s601
        %s603 = sand.u32 %s24, 1
        %s604 = scalar_lea.sflag [#allocation5], %s603
        %s605 = sand.u32 %s175, 1
        %s606 = smul.addr %s605, 4
        %s607 = scalar_lea.vmem [#allocation4], %s606
        %s608 = sand.u32 %s24, 1
        %s609 = scalar_lea.sflag [#allocation5], %s608
        %s610 = sand.u32 %s203, 1
        %s611 = smul.addr %s610, 4
        %s612 = scalar_lea.vmem [#allocation6], %s611
        // Predicated region
        $region37: #{tpu_custom_call.1} parent=35 // pred_check
          %p613 = pneg %p157
        $region38: #{tpu_custom_call.1} parent=35 // pred_check_branch
          %615 = sbr.rel (%p613) target = $region40
        $region39: #{tpu_custom_call.1} parent=35 // pred_region
          %s617 = ssub.s32 64, 64
          %618 = vsyncadd %s599, %s617
          %s619 = sadd.s32 %s28, %s29
          %s620 = smul.addr %s619, 64
          %s621 = scalar_lea.hbm %s4, %s620
          %s623 = sshll.u32 %s602, 4
          %s624 = int_to_ptr.vmem [resolvable:$true] %s623
          %626 = dma.vmem_to_hbm [thread:$0]  %s624, 64, %s621, %s599
        $region40: #{tpu_custom_call.1} parent=35 // pred_fallthru
          _
        // Predicated region
        $region41: #{tpu_custom_call.1} parent=35 // pred_check
          %p627 = pneg %p185
        $region42: #{tpu_custom_call.1} parent=35 // pred_check_branch
          %629 = sbr.rel (%p627) target = $region44
        $region43: #{tpu_custom_call.1} parent=35 // pred_region
          %s631 = ssub.s32 64, 64
          %632 = vsyncadd %s604, %s631
          %s633 = sadd.s32 %s28, %s29
          %s634 = smul.addr %s633, 64
          %s635 = scalar_lea.hbm %s5, %s634
          %s637 = sshll.u32 %s607, 4
          %s638 = int_to_ptr.vmem [resolvable:$true] %s637
          %640 = dma.vmem_to_hbm [thread:$0]  %s638, 64, %s635, %s604
        $region44: #{tpu_custom_call.1} parent=35 // pred_fallthru
          _
        // Predicated region
        $region45: #{tpu_custom_call.1} parent=35 // pred_check
          %p641 = pneg %p213
        $region46: #{tpu_custom_call.1} parent=35 // pred_check_branch
          %643 = sbr.rel (%p641) target = $region48
        $region47: #{tpu_custom_call.1} parent=35 // pred_region
          %s645 = ssub.s32 64, 64
          %646 = vsyncadd %s609, %s645
          %s647 = sadd.s32 %s28, %s29
          %s648 = smul.addr %s647, 64
          %s649 = scalar_lea.hbm %s6, %s648
          %s651 = sshll.u32 %s612, 4
          %s652 = int_to_ptr.vmem [resolvable:$true] %s651
          %654 = dma.vmem_to_hbm [thread:$0]  %s652, 64, %s649, %s609
        $region48: #{tpu_custom_call.1} parent=35 // pred_fallthru
          _
      $region36: #{tpu_custom_call.1} parent=5 // pred_fallthru
        _
      %p655 = scmp.le.s32.totalorder 2, %s19
      // Predicated region
      $region49: #{tpu_custom_call.1} parent=5 // pred_check
        %p656 = pneg %p655
      $region50: #{tpu_custom_call.1} parent=5 // pred_check_branch
        %658 = sbr.rel (%p656) target = $region52
      $region51: #{tpu_custom_call.1} parent=5 // pred_region
        %s659 = ssub.s32 %s19, 2
        // Predicated region
        $region53: #{tpu_custom_call.1} parent=51 // pred_check
          %p660 = pneg %p163
        $region54: #{tpu_custom_call.1} parent=51 // pred_check_branch
          %662 = sbr.rel (%p660) target = $region56
        $region55: #{tpu_custom_call.1} parent=51 // pred_region
          %s663 = sand.u32 %s148, 1
          %s664 = scalar_lea.sflag [#allocation3], %s663
          %s665 = sand.u32 %s148, 1
          %s666 = smul.addr %s665, 4
          %s667 = scalar_lea.vmem [#allocation2], %s666
          %668 = dma.done %s664, 64
        $region56: #{tpu_custom_call.1} parent=51 // pred_fallthru
          _
        // Predicated region
        $region57: #{tpu_custom_call.1} parent=51 // pred_check
          %p669 = pneg %p191
        $region58: #{tpu_custom_call.1} parent=51 // pred_check_branch
          %671 = sbr.rel (%p669) target = $region60
        $region59: #{tpu_custom_call.1} parent=51 // pred_region
          %s672 = sand.u32 %s25, 1
          %s673 = scalar_lea.sflag [#allocation5], %s672
          %s674 = sand.u32 %s176, 1
          %s675 = smul.addr %s674, 4
          %s676 = scalar_lea.vmem [#allocation4], %s675
          %677 = dma.done %s673, 64
        $region60: #{tpu_custom_call.1} parent=51 // pred_fallthru
          _
        // Predicated region
        $region61: #{tpu_custom_call.1} parent=51 // pred_check
          %p678 = pneg %p219
        $region62: #{tpu_custom_call.1} parent=51 // pred_check_branch
          %680 = sbr.rel (%p678) target = $region64
        $region63: #{tpu_custom_call.1} parent=51 // pred_region
          %s681 = sand.u32 %s25, 1
          %s682 = scalar_lea.sflag [#allocation5], %s681
          %s683 = sand.u32 %s204, 1
          %s684 = smul.addr %s683, 4
          %s685 = scalar_lea.vmem [#allocation6], %s684
          %686 = dma.done %s682, 64
        $region64: #{tpu_custom_call.1} parent=51 // pred_fallthru
          _
      $region52: #{tpu_custom_call.1} parent=5 // pred_fallthru
        _
    $region6: #{tpu_custom_call.1} parent=1 // loop_footer
      %s23 = sadd.s32 1, %s19
    $region7: #{tpu_custom_call.1} parent=1 // loop_footer_branch
      %18 = sbr.rel target = $region3
    $region8: #{tpu_custom_call.1} parent=1 // loop_exit
      _
    %687 = vsyncpa [#allocation3], 1
    %s688 = scalar_lea.sflag [#allocation3], 1
    %689 = vsyncpa %s688, 1
    %690 = vsyncpa [#allocation5], 1
    %s691 = scalar_lea.sflag [#allocation5], 1
    %692 = vsyncpa %s691, 1

</llo_original>
